<compile_context>
chip_gen: v6e
topology: v6e:2x2x1
jax: 0.10.0
libtpu: 0.0.40
codegen_flags: <defaults>
</compile_context>

<pallas_src>
import functools

import jax
import jax.numpy as jnp
from jax.experimental import pallas as pl
from jax.experimental.pallas import tpu as pltpu


# ---------------------------------------------------------------------------
# Pallas kernel: the whole forward pass, fused.
# ---------------------------------------------------------------------------
def _cnn3_fc3_kernel(p_ref, w1_ref, b1_ref, w2_ref, b2_ref, w3_ref, b3_ref,
                     wl1_ref, bl1_ref, wl2_ref, bl2_ref, wl3_ref, bl3_ref,
                     o_ref, pack_ref, *, n_batch, n_pos, g_pad, oc2):
    f32 = jnp.float32
    bf16 = jnp.bfloat16

    # conv1 (+BN1 scale folded, +bias, +ReLU): one block-diagonal GEMM over all
    # 9 conv2 taps; result columns are already (t2, out_ch) lane stripes.
    z1 = jnp.dot(p_ref[...], w1_ref[...], preferred_element_type=f32)
    z1 = jnp.maximum(z1 + b1_ref[...], 0.0).astype(bf16)        # (9*g_pad, 9c)

    # conv2 (+BN2, +ReLU): single GEMM, 9 taps contracted along K = 9c.
    z2 = jnp.dot(z1, w2_ref[...], preferred_element_type=f32)
    z2 = jnp.maximum(z2 + b2_ref[...], 0.0)                     # (9*g_pad, 2c)
    # z2 rows are ordered (t3, b, p): 9 aligned row blocks of g_pad rows each.

    # conv3: pack the 9 t3 row blocks into lane stripes of a VMEM scratch
    # (sublane-aligned reads, static lane-stripe writes), then ONE K=9*2c GEMM.
    for t3 in range(9):
        pack_ref[:, t3 * oc2:(t3 + 1) * oc2] = z2[t3 * g_pad:(t3 + 1) * g_pad, :]
    y3 = jnp.dot(pack_ref[...].astype(bf16), w3_ref[...],
                 preferred_element_type=f32)
    y3 = jnp.maximum(y3 + b3_ref[...], 0.0)                     # (g_pad, 4c)

    # Global spatial max: rows are batch-major, so each batch is a single
    # contiguous cross-sublane reduce; padded rows (g >= n_batch*n_pos) are
    # never read, so no masking is needed.
    parts = [jnp.max(y3[b * n_pos:(b + 1) * n_pos, :], axis=0, keepdims=True)
             for b in range(n_batch)]
    m = jnp.concatenate(parts, axis=0).astype(bf16)             # (B, 4c)

    # ---- FC stack -----------------------------------------------------------
    h = jnp.maximum(jnp.dot(m, wl1_ref[...], preferred_element_type=f32)
                    + bl1_ref[...], 0.0).astype(bf16)
    h = jnp.maximum(jnp.dot(h, wl2_ref[...], preferred_element_type=f32)
                    + bl2_ref[...], 0.0).astype(bf16)
    # TODO(synk): Dropout(0.25) is identity in eval mode.
    logits = jnp.dot(h, wl3_ref[...], preferred_element_type=f32) + bl3_ref[...]
    o_ref[...] = jax.nn.sigmoid(logits).astype(o_ref.dtype)


# ---------------------------------------------------------------------------
# XLA glue: composite conv1 patches, emitted lane-dense in bf16.
# Rows:    r = t3 * g_pad + g,  t3 = kh3*3+kw3,  g = b*n_pos + (oh3*ow3 pos),
#          rows with g >= B*n_pos are zero padding (g_pad is a multiple of 8).
# Columns: c = (kh2*3+kw2)*64 + (kh1*8+kw1).
# Raw-image index:  h = 16*oh3 + 8*kh3 + 4*kh2 + kh1  (and same for w).
# ---------------------------------------------------------------------------
def _build_patches(x):
    B, IC, H, W = x.shape
    assert IC == 1
    oh1, ow1 = (H - 8) // 4 + 1, (W - 8) // 4 + 1
    oh2, ow2 = (oh1 - 3) // 2 + 1, (ow1 - 3) // 2 + 1
    oh3, ow3 = (oh2 - 3) // 2 + 1, (ow2 - 3) // 2 + 1
    n_pos = oh3 * ow3
    g = B * n_pos
    g_pad = ((g + 7) // 8) * 8

    r3 = jnp.arange(3)
    k8 = jnp.arange(8)
    hidx = (16 * jnp.arange(oh3)[:, None, None, None]
            + 8 * r3[None, :, None, None]
            + 4 * r3[None, None, :, None]
            + k8[None, None, None, :]).reshape(-1)
    widx = (16 * jnp.arange(ow3)[:, None, None, None]
            + 8 * r3[None, :, None, None]
            + 4 * r3[None, None, :, None]
            + k8[None, None, None, :]).reshape(-1)

    p = jnp.take(x[:, 0], hidx, axis=1)           # (B, oh3*3*3*8, W)
    p = jnp.take(p, widx, axis=2)                 # (B, oh3*3*3*8, ow3*3*3*8)
    p = p.reshape(B, oh3, 3, 3, 8, ow3, 3, 3, 8)
    # axes: (b, oh3, kh3, kh2, kh1, ow3, kw3, kw2, kw1)
    #   ->  (kh3, kw3, b, oh3, ow3, kh2, kw2, kh1, kw1)
    p = p.transpose(2, 6, 0, 1, 5, 3, 7, 4, 8)
    p = p.reshape(9, g, 9 * 64)
    if g_pad != g:
        p = jnp.pad(p, ((0, 0), (0, g_pad - g), (0, 0)))
    return p.reshape(9 * g_pad, 9 * 64).astype(jnp.bfloat16), n_pos, g_pad


# ---------------------------------------------------------------------------
# Wrapper: fold BN into weights/bias, pack taps into K, one pallas_call.
# ---------------------------------------------------------------------------
def cnn3_fc3_forward(x, p, eps=1e-5):
    B = x.shape[0]
    c = p["c1_w"].shape[0]
    od = p["l3_w"].shape[1]
    bf16 = jnp.bfloat16

    patches, n_pos, g_pad = _build_patches(x)

    def fold(b_conv, gamma, beta, mean, var):
        s = gamma / jnp.sqrt(var + eps)
        return s, (b_conv - mean) * s + beta

    s1, a1 = fold(p["c1_b"], p["bn1_g"], p["bn1_b"], p["bn1_m"], p["bn1_v"])
    s2, a2 = fold(p["c2_b"], p["bn2_g"], p["bn2_b"], p["bn2_m"], p["bn2_v"])
    s3, a3 = fold(p["c3_b"], p["bn3_g"], p["bn3_b"], p["bn3_m"], p["bn3_v"])

    # conv1: BN1 scale folded into columns, expanded to a block-diagonal
    # (576, 9c) weight so one GEMM emits all 9 conv2-tap slabs as lane stripes.
    w1s = p["c1_w"].reshape(c, 64).T * s1[None, :]              # (64, c)
    w1bd = jnp.kron(jnp.eye(9, dtype=w1s.dtype), w1s)           # (576, 9c)
    b1 = jnp.tile(a1, 9)[None, :]                               # (1, 9c)

    # conv2: taps packed into K = 9c; BN2 scale folded into columns.
    w2 = p["c2_w"].transpose(2, 3, 1, 0).reshape(9 * c, 2 * c) * s2[None, :]
    b2 = a2[None, :]
    # conv3: taps packed into K = 9*2c; BN3 scale folded into columns.
    w3 = p["c3_w"].transpose(2, 3, 1, 0).reshape(9 * 2 * c, 4 * c) * s3[None, :]
    b3 = a3[None, :]

    args = (patches,
            w1bd.astype(bf16), b1,
            w2.astype(bf16), b2,
            w3.astype(bf16), b3,
            p["l1_w"].astype(bf16), p["l1_b"][None, :],
            p["l2_w"].astype(bf16), p["l2_b"][None, :],
            p["l3_w"].astype(bf16), p["l3_b"][None, :])

    def full_spec(a):
        nd = a.ndim
        return pl.BlockSpec(a.shape, lambda i, _nd=nd: (0,) * _nd)

    kernel = functools.partial(_cnn3_fc3_kernel,
                               n_batch=B, n_pos=n_pos, g_pad=g_pad, oc2=2 * c)
    return pl.pallas_call(
        kernel,
        out_shape=jax.ShapeDtypeStruct((B, od), jnp.float32),
        grid=(1,),
        in_specs=[full_spec(a) for a in args],
        out_specs=pl.BlockSpec((B, od), lambda i: (0, 0)),
        scratch_shapes=[pltpu.VMEM((g_pad, 9 * 2 * c), jnp.float32)],
        compiler_params=pltpu.CompilerParams(
            dimension_semantics=("arbitrary",)),
    )(*args)


# ---------------------------------------------------------------------------
# Pure-JAX reference (for the correctness self-check)
# ---------------------------------------------------------------------------
def reference_forward(x, p, eps=1e-5):
    hp = jax.lax.Precision.HIGHEST

    def conv_bn_relu(x, w, b, g, bt, m, v, stride):
        y = jax.lax.conv_general_dilated(
            x, w, (stride, stride), "VALID",
            dimension_numbers=("NCHW", "OIHW", "NCHW"), precision=hp)
        y = y + b[None, :, None, None]
        y = (y - m[None, :, None, None]) * (
            g[None, :, None, None] / jnp.sqrt(v[None, :, None, None] + eps)
        ) + bt[None, :, None, None]
        return jnp.maximum(y, 0.0)

    x = conv_bn_relu(x, p["c1_w"], p["c1_b"], p["bn1_g"], p["bn1_b"],
                     p["bn1_m"], p["bn1_v"], 4)
    x = conv_bn_relu(x, p["c2_w"], p["c2_b"], p["bn2_g"], p["bn2_b"],
                     p["bn2_m"], p["bn2_v"], 2)
    x = conv_bn_relu(x, p["c3_w"], p["c3_b"], p["bn3_g"], p["bn3_b"],
                     p["bn3_m"], p["bn3_v"], 2)
    x = jnp.max(x, axis=(2, 3))
    x = jnp.maximum(jnp.dot(x, p["l1_w"], precision=hp) + p["l1_b"], 0.0)
    x = jnp.maximum(jnp.dot(x, p["l2_w"], precision=hp) + p["l2_b"], 0.0)
    return jax.nn.sigmoid(jnp.dot(x, p["l3_w"], precision=hp) + p["l3_b"])


# ---------------------------------------------------------------------------
# Deterministic parameter construction
# ---------------------------------------------------------------------------
def make_params(key, c, output_dim):
    ks = jax.random.split(key, 16)
    f32 = jnp.float32

    def nrm(k, shape, s=0.05):
        return (s * jax.random.normal(k, shape)).astype(f32)

    p = {}
    # conv1: 1 -> c, k=8,s=4 ; conv2: c -> 2c, k=3,s=2 ; conv3: 2c -> 4c, k=3,s=2
    p["c1_w"] = nrm(ks[0], (c, 1, 8, 8))
    p["c1_b"] = nrm(ks[1], (c,))
    p["c2_w"] = nrm(ks[2], (2 * c, c, 3, 3))
    p["c2_b"] = nrm(ks[3], (2 * c,))
    p["c3_w"] = nrm(ks[4], (4 * c, 2 * c, 3, 3))
    p["c3_b"] = nrm(ks[5], (4 * c,))
    # BatchNorm params (running stats, eval semantics)
    for i, ch in zip((1, 2, 3), (c, 2 * c, 4 * c)):
        kk = jax.random.split(ks[5 + i], 4)
        p[f"bn{i}_g"] = (1.0 + 0.1 * jax.random.normal(kk[0], (ch,))).astype(f32)
        p[f"bn{i}_b"] = nrm(kk[1], (ch,))
        p[f"bn{i}_m"] = nrm(kk[2], (ch,))
        p[f"bn{i}_v"] = (1.0 + 0.1 * jax.random.uniform(kk[3], (ch,))).astype(f32)
    # Linear layers (stored as (in, out); PyTorch keeps (out, in))
    d1, d2, d3 = 4 * c, 128 * output_dim, 16 * output_dim
    p["l1_w"] = nrm(ks[9], (d1, d2))
    p["l1_b"] = nrm(ks[10], (d2,))
    p["l2_w"] = nrm(ks[11], (d2, d3))
    p["l2_b"] = nrm(ks[12], (d3,))
    p["l3_w"] = nrm(ks[13], (d3, output_dim))
    p["l3_b"] = nrm(ks[14], (output_dim,))
    return p


if __name__ == "__main__":
    key = jax.random.PRNGKey(0)
    k_x, k_p = jax.random.split(key)

    B, c, output_dim = 2, 8, 4
    # 64x64 input -> conv1: 15x15 -> conv2: 7x7 -> conv3: 3x3 (then global max)
    x = jax.random.normal(k_x, (B, 1, 64, 64), dtype=jnp.float32)
    params = make_params(k_p, c=c, output_dim=output_dim)

    fwd = jax.jit(cnn3_fc3_forward)
    y = jax.block_until_ready(fwd(x, params))

    assert y.shape == (B, output_dim), y.shape
    assert bool(jnp.all(jnp.isfinite(y)))
    assert bool(jnp.all((y >= 0.0) & (y <= 1.0)))        # sigmoid output range
    y_ref = reference_forward(x, params)
    assert bool(jnp.allclose(y, y_ref, rtol=5e-3, atol=5e-3)), (y, y_ref)
    print("KERNEL_OK")
</pallas_src>

<mosaic_0001>
module attributes {stable_mosaic.version = 11 : i64} {
  func.func @_cnn3_fc3_kernel(%arg0: i32, %arg1: memref<216x576xbf16, #tpu.memory_space<vmem>>, %arg2: memref<576x72xbf16, #tpu.memory_space<vmem>>, %arg3: memref<1x72xf32, #tpu.memory_space<vmem>>, %arg4: memref<72x16xbf16, #tpu.memory_space<vmem>>, %arg5: memref<1x16xf32, #tpu.memory_space<vmem>>, %arg6: memref<144x32xbf16, #tpu.memory_space<vmem>>, %arg7: memref<1x32xf32, #tpu.memory_space<vmem>>, %arg8: memref<32x512xbf16, #tpu.memory_space<vmem>>, %arg9: memref<1x512xf32, #tpu.memory_space<vmem>>, %arg10: memref<512x64xbf16, #tpu.memory_space<vmem>>, %arg11: memref<1x64xf32, #tpu.memory_space<vmem>>, %arg12: memref<64x4xbf16, #tpu.memory_space<vmem>>, %arg13: memref<1x4xf32, #tpu.memory_space<vmem>>, %arg14: memref<2x4xf32, #tpu.memory_space<vmem>>, %arg15: memref<24x144xf32, #tpu.memory_space<vmem>>) attributes {dimension_semantics = [#tpu.dimension_semantics<arbitrary>], iteration_bounds = array<i64: 1>, scalar_prefetch = 0 : i64, scratch_operands = 1 : i64, tpu.core_type = #tpu.core_type<tc>, window_params = [{pipeline_mode = #tpu.pipeline_mode<synchronous>, transform_indices = @transform_0, window_bounds = array<i64: 216, 576>}, {pipeline_mode = #tpu.pipeline_mode<synchronous>, transform_indices = @transform_1, window_bounds = array<i64: 576, 72>}, {pipeline_mode = #tpu.pipeline_mode<synchronous>, transform_indices = @transform_2, window_bounds = array<i64: 1, 72>}, {pipeline_mode = #tpu.pipeline_mode<synchronous>, transform_indices = @transform_3, window_bounds = array<i64: 72, 16>}, {pipeline_mode = #tpu.pipeline_mode<synchronous>, transform_indices = @transform_4, window_bounds = array<i64: 1, 16>}, {pipeline_mode = #tpu.pipeline_mode<synchronous>, transform_indices = @transform_5, window_bounds = array<i64: 144, 32>}, {pipeline_mode = #tpu.pipeline_mode<synchronous>, transform_indices = @transform_6, window_bounds = array<i64: 1, 32>}, {pipeline_mode = #tpu.pipeline_mode<synchronous>, transform_indices = @transform_7, window_bounds = array<i64: 32, 512>}, {pipeline_mode = #tpu.pipeline_mode<synchronous>, transform_indices = @transform_8, window_bounds = array<i64: 1, 512>}, {pipeline_mode = #tpu.pipeline_mode<synchronous>, transform_indices = @transform_9, window_bounds = array<i64: 512, 64>}, {pipeline_mode = #tpu.pipeline_mode<synchronous>, transform_indices = @transform_10, window_bounds = array<i64: 1, 64>}, {pipeline_mode = #tpu.pipeline_mode<synchronous>, transform_indices = @transform_11, window_bounds = array<i64: 64, 4>}, {pipeline_mode = #tpu.pipeline_mode<synchronous>, transform_indices = @transform_12, window_bounds = array<i64: 1, 4>}, {pipeline_mode = #tpu.pipeline_mode<synchronous>, transform_indices = @transform_13, window_bounds = array<i64: 2, 4>}]} {
    %c0 = arith.constant 0 : index
    %c0_0 = arith.constant 0 : index
    %0 = vector.load %arg1[%c0, %c0_0] : memref<216x576xbf16, #tpu.memory_space<vmem>>, vector<216x576xbf16>
    %c0_1 = arith.constant 0 : index
    %c0_2 = arith.constant 0 : index
    %1 = vector.load %arg2[%c0_1, %c0_2] : memref<576x72xbf16, #tpu.memory_space<vmem>>, vector<576x72xbf16>
    %cst = arith.constant dense<0.000000e+00> : vector<216x72xf32>
    %2 = tpu.matmul %0, %1, %cst {dimension_numbers = #tpu.dot_dimension_numbers<[1], [0], [0], [1], [0, 0, 1, 1], [], []>} : vector<216x576xbf16>, vector<576x72xbf16>, vector<216x72xf32> -> vector<216x72xf32>
    %c0_3 = arith.constant 0 : index
    %c0_4 = arith.constant 0 : index
    %3 = vector.load %arg3[%c0_3, %c0_4] : memref<1x72xf32, #tpu.memory_space<vmem>>, vector<1x72xf32>
    %4 = vector.broadcast %3 : vector<1x72xf32> to vector<216x72xf32>
    %5 = arith.addf %2, %4 : vector<216x72xf32>
    %cst_5 = arith.constant 0.000000e+00 : f32
    %6 = vector.broadcast %cst_5 : f32 to vector<216x72xf32>
    %7 = arith.maximumf %5, %6 : vector<216x72xf32>
    %8 = arith.truncf %7 : vector<216x72xf32> to vector<216x72xbf16>
    %c0_6 = arith.constant 0 : index
    %c0_7 = arith.constant 0 : index
    %9 = vector.load %arg4[%c0_6, %c0_7] : memref<72x16xbf16, #tpu.memory_space<vmem>>, vector<72x16xbf16>
    %cst_8 = arith.constant dense<0.000000e+00> : vector<216x16xf32>
    %10 = tpu.matmul %8, %9, %cst_8 {dimension_numbers = #tpu.dot_dimension_numbers<[1], [0], [0], [1], [0, 0, 1, 1], [], []>} : vector<216x72xbf16>, vector<72x16xbf16>, vector<216x16xf32> -> vector<216x16xf32>
    %c0_9 = arith.constant 0 : index
    %c0_10 = arith.constant 0 : index
    %11 = vector.load %arg5[%c0_9, %c0_10] : memref<1x16xf32, #tpu.memory_space<vmem>>, vector<1x16xf32>
    %12 = vector.broadcast %11 : vector<1x16xf32> to vector<216x16xf32>
    %13 = arith.addf %10, %12 : vector<216x16xf32>
    %cst_11 = arith.constant 0.000000e+00 : f32
    %14 = vector.broadcast %cst_11 : f32 to vector<216x16xf32>
    %15 = arith.maximumf %13, %14 : vector<216x16xf32>
    %16 = vector.extract_strided_slice %15 {offsets = [0, 0], sizes = [24, 16], strides = [1, 1]} : vector<216x16xf32> to vector<24x16xf32>
    %c0_12 = arith.constant 0 : index
    %c0_13 = arith.constant 0 : index
    %17 = vector.load %arg15[%c0_12, %c0_13] : memref<24x144xf32, #tpu.memory_space<vmem>>, vector<24x16xf32>
    tpu.vector_store %arg15[%c0_12, %c0_13], %16 {strides = array<i32>} : memref<24x144xf32, #tpu.memory_space<vmem>>, vector<24x16xf32>,
    %18 = vector.extract_strided_slice %15 {offsets = [24, 0], sizes = [24, 16], strides = [1, 1]} : vector<216x16xf32> to vector<24x16xf32>
    %c0_14 = arith.constant 0 : index
    %c16 = arith.constant 16 : index
    %19 = vector.load %arg15[%c0_14, %c16] : memref<24x144xf32, #tpu.memory_space<vmem>>, vector<24x16xf32>
    tpu.vector_store %arg15[%c0_14, %c16], %18 {strides = array<i32>} : memref<24x144xf32, #tpu.memory_space<vmem>>, vector<24x16xf32>,
    %20 = vector.extract_strided_slice %15 {offsets = [48, 0], sizes = [24, 16], strides = [1, 1]} : vector<216x16xf32> to vector<24x16xf32>
    %c0_15 = arith.constant 0 : index
    %c32 = arith.constant 32 : index
    %21 = vector.load %arg15[%c0_15, %c32] : memref<24x144xf32, #tpu.memory_space<vmem>>, vector<24x16xf32>
    tpu.vector_store %arg15[%c0_15, %c32], %20 {strides = array<i32>} : memref<24x144xf32, #tpu.memory_space<vmem>>, vector<24x16xf32>,
    %22 = vector.extract_strided_slice %15 {offsets = [72, 0], sizes = [24, 16], strides = [1, 1]} : vector<216x16xf32> to vector<24x16xf32>
    %c0_16 = arith.constant 0 : index
    %c48 = arith.constant 48 : index
    %23 = vector.load %arg15[%c0_16, %c48] : memref<24x144xf32, #tpu.memory_space<vmem>>, vector<24x16xf32>
    tpu.vector_store %arg15[%c0_16, %c48], %22 {strides = array<i32>} : memref<24x144xf32, #tpu.memory_space<vmem>>, vector<24x16xf32>,
    %24 = vector.extract_strided_slice %15 {offsets = [96, 0], sizes = [24, 16], strides = [1, 1]} : vector<216x16xf32> to vector<24x16xf32>
    %c0_17 = arith.constant 0 : index
    %c64 = arith.constant 64 : index
    %25 = vector.load %arg15[%c0_17, %c64] : memref<24x144xf32, #tpu.memory_space<vmem>>, vector<24x16xf32>
    tpu.vector_store %arg15[%c0_17, %c64], %24 {strides = array<i32>} : memref<24x144xf32, #tpu.memory_space<vmem>>, vector<24x16xf32>,
    %26 = vector.extract_strided_slice %15 {offsets = [120, 0], sizes = [24, 16], strides = [1, 1]} : vector<216x16xf32> to vector<24x16xf32>
    %c0_18 = arith.constant 0 : index
    %c80 = arith.constant 80 : index
    %27 = vector.load %arg15[%c0_18, %c80] : memref<24x144xf32, #tpu.memory_space<vmem>>, vector<24x16xf32>
    tpu.vector_store %arg15[%c0_18, %c80], %26 {strides = array<i32>} : memref<24x144xf32, #tpu.memory_space<vmem>>, vector<24x16xf32>,
    %28 = vector.extract_strided_slice %15 {offsets = [144, 0], sizes = [24, 16], strides = [1, 1]} : vector<216x16xf32> to vector<24x16xf32>
    %c0_19 = arith.constant 0 : index
    %c96 = arith.constant 96 : index
    %29 = vector.load %arg15[%c0_19, %c96] : memref<24x144xf32, #tpu.memory_space<vmem>>, vector<24x16xf32>
    tpu.vector_store %arg15[%c0_19, %c96], %28 {strides = array<i32>} : memref<24x144xf32, #tpu.memory_space<vmem>>, vector<24x16xf32>,
    %30 = vector.extract_strided_slice %15 {offsets = [168, 0], sizes = [24, 16], strides = [1, 1]} : vector<216x16xf32> to vector<24x16xf32>
    %c0_20 = arith.constant 0 : index
    %c112 = arith.constant 112 : index
    %31 = vector.load %arg15[%c0_20, %c112] : memref<24x144xf32, #tpu.memory_space<vmem>>, vector<24x16xf32>
    tpu.vector_store %arg15[%c0_20, %c112], %30 {strides = array<i32>} : memref<24x144xf32, #tpu.memory_space<vmem>>, vector<24x16xf32>,
    %32 = vector.extract_strided_slice %15 {offsets = [192, 0], sizes = [24, 16], strides = [1, 1]} : vector<216x16xf32> to vector<24x16xf32>
    %c0_21 = arith.constant 0 : index
    %c128 = arith.constant 128 : index
    %33 = vector.load %arg15[%c0_21, %c128] : memref<24x144xf32, #tpu.memory_space<vmem>>, vector<24x16xf32>
    tpu.vector_store %arg15[%c0_21, %c128], %32 {strides = array<i32>} : memref<24x144xf32, #tpu.memory_space<vmem>>, vector<24x16xf32>,
    %c0_22 = arith.constant 0 : index
    %c0_23 = arith.constant 0 : index
    %34 = vector.load %arg15[%c0_22, %c0_23] : memref<24x144xf32, #tpu.memory_space<vmem>>, vector<24x144xf32>
    %35 = arith.truncf %34 : vector<24x144xf32> to vector<24x144xbf16>
    %c0_24 = arith.constant 0 : index
    %c0_25 = arith.constant 0 : index
    %36 = vector.load %arg6[%c0_24, %c0_25] : memref<144x32xbf16, #tpu.memory_space<vmem>>, vector<144x32xbf16>
    %cst_26 = arith.constant dense<0.000000e+00> : vector<24x32xf32>
    %37 = tpu.matmul %35, %36, %cst_26 {dimension_numbers = #tpu.dot_dimension_numbers<[1], [0], [0], [1], [0, 0, 1, 1], [], []>} : vector<24x144xbf16>, vector<144x32xbf16>, vector<24x32xf32> -> vector<24x32xf32>
    %c0_27 = arith.constant 0 : index
    %c0_28 = arith.constant 0 : index
    %38 = vector.load %arg7[%c0_27, %c0_28] : memref<1x32xf32, #tpu.memory_space<vmem>>, vector<1x32xf32>
    %39 = vector.broadcast %38 : vector<1x32xf32> to vector<24x32xf32>
    %40 = arith.addf %37, %39 : vector<24x32xf32>
    %cst_29 = arith.constant 0.000000e+00 : f32
    %41 = vector.broadcast %cst_29 : f32 to vector<24x32xf32>
    %42 = arith.maximumf %40, %41 : vector<24x32xf32>
    %43 = vector.extract_strided_slice %42 {offsets = [0, 0], sizes = [9, 32], strides = [1, 1]} : vector<24x32xf32> to vector<9x32xf32>
    %cst_30 = arith.constant dense<0xFF800000> : vector<32xf32>
    %44 = vector.multi_reduction <maximumf>, %43, %cst_30 [0] : vector<9x32xf32> to vector<32xf32>
    %45 = vector.shape_cast %44 : vector<32xf32> to vector<1x32xf32>
    %46 = vector.extract_strided_slice %42 {offsets = [9, 0], sizes = [9, 32], strides = [1, 1]} : vector<24x32xf32> to vector<9x32xf32>
    %cst_31 = arith.constant dense<0xFF800000> : vector<32xf32>
    %47 = vector.multi_reduction <maximumf>, %46, %cst_31 [0] : vector<9x32xf32> to vector<32xf32>
    %48 = vector.shape_cast %47 : vector<32xf32> to vector<1x32xf32>
    %49 = tpu.concatenate %45, %48 in 0 : vector<1x32xf32>, vector<1x32xf32> -> vector<2x32xf32>
    %50 = arith.truncf %49 : vector<2x32xf32> to vector<2x32xbf16>
    %c0_32 = arith.constant 0 : index
    %c0_33 = arith.constant 0 : index
    %51 = vector.load %arg8[%c0_32, %c0_33] : memref<32x512xbf16, #tpu.memory_space<vmem>>, vector<32x512xbf16>
    %cst_34 = arith.constant dense<0.000000e+00> : vector<2x512xf32>
    %52 = tpu.matmul %50, %51, %cst_34 {dimension_numbers = #tpu.dot_dimension_numbers<[1], [0], [0], [1], [0, 0, 1, 1], [], []>} : vector<2x32xbf16>, vector<32x512xbf16>, vector<2x512xf32> -> vector<2x512xf32>
    %c0_35 = arith.constant 0 : index
    %c0_36 = arith.constant 0 : index
    %53 = vector.load %arg9[%c0_35, %c0_36] : memref<1x512xf32, #tpu.memory_space<vmem>>, vector<1x512xf32>
    %54 = vector.broadcast %53 : vector<1x512xf32> to vector<2x512xf32>
    %55 = arith.addf %52, %54 : vector<2x512xf32>
    %cst_37 = arith.constant 0.000000e+00 : f32
    %56 = vector.broadcast %cst_37 : f32 to vector<2x512xf32>
    %57 = arith.maximumf %55, %56 : vector<2x512xf32>
    %58 = arith.truncf %57 : vector<2x512xf32> to vector<2x512xbf16>
    %c0_38 = arith.constant 0 : index
    %c0_39 = arith.constant 0 : index
    %59 = vector.load %arg10[%c0_38, %c0_39] : memref<512x64xbf16, #tpu.memory_space<vmem>>, vector<512x64xbf16>
    %cst_40 = arith.constant dense<0.000000e+00> : vector<2x64xf32>
    %60 = tpu.matmul %58, %59, %cst_40 {dimension_numbers = #tpu.dot_dimension_numbers<[1], [0], [0], [1], [0, 0, 1, 1], [], []>} : vector<2x512xbf16>, vector<512x64xbf16>, vector<2x64xf32> -> vector<2x64xf32>
    %c0_41 = arith.constant 0 : index
    %c0_42 = arith.constant 0 : index
    %61 = vector.load %arg11[%c0_41, %c0_42] : memref<1x64xf32, #tpu.memory_space<vmem>>, vector<1x64xf32>
    %62 = vector.broadcast %61 : vector<1x64xf32> to vector<2x64xf32>
    %63 = arith.addf %60, %62 : vector<2x64xf32>
    %cst_43 = arith.constant 0.000000e+00 : f32
    %64 = vector.broadcast %cst_43 : f32 to vector<2x64xf32>
    %65 = arith.maximumf %63, %64 : vector<2x64xf32>
    %66 = arith.truncf %65 : vector<2x64xf32> to vector<2x64xbf16>
    %c0_44 = arith.constant 0 : index
    %c0_45 = arith.constant 0 : index
    %67 = vector.load %arg12[%c0_44, %c0_45] : memref<64x4xbf16, #tpu.memory_space<vmem>>, vector<64x4xbf16>
    %cst_46 = arith.constant dense<0.000000e+00> : vector<2x4xf32>
    %68 = tpu.matmul %66, %67, %cst_46 {dimension_numbers = #tpu.dot_dimension_numbers<[1], [0], [0], [1], [0, 0, 1, 1], [], []>} : vector<2x64xbf16>, vector<64x4xbf16>, vector<2x4xf32> -> vector<2x4xf32>
    %c0_47 = arith.constant 0 : index
    %c0_48 = arith.constant 0 : index
    %69 = vector.load %arg13[%c0_47, %c0_48] : memref<1x4xf32, #tpu.memory_space<vmem>>, vector<1x4xf32>
    %70 = vector.broadcast %69 : vector<1x4xf32> to vector<2x4xf32>
    %71 = arith.addf %68, %70 : vector<2x4xf32>
    %72 = arith.negf %71 : vector<2x4xf32>
    %73 = math.exp %72 : vector<2x4xf32>
    %cst_49 = arith.constant 1.000000e+00 : f32
    %74 = vector.broadcast %cst_49 : f32 to vector<2x4xf32>
    %75 = arith.addf %74, %73 : vector<2x4xf32>
    %76 = arith.divf %74, %75 : vector<2x4xf32>
    %c0_50 = arith.constant 0 : index
    %c0_51 = arith.constant 0 : index
    %77 = vector.load %arg14[%c0_50, %c0_51] : memref<2x4xf32, #tpu.memory_space<vmem>>, vector<2x4xf32>
    tpu.vector_store %arg14[%c0_50, %c0_51], %76 {strides = array<i32>} : memref<2x4xf32, #tpu.memory_space<vmem>>, vector<2x4xf32>,
    return
  }
  func.func @transform_0(%arg0: i32) -> (i32, i32) {
    %c0_i32 = arith.constant 0 : i32
    %c0_i32_0 = arith.constant 0 : i32
    %c0_i32_1 = arith.constant 0 : i32
    return %c0_i32, %c0_i32_0 : i32, i32
  }
  func.func @transform_1(%arg0: i32) -> (i32, i32) {
    %c0_i32 = arith.constant 0 : i32
    %c0_i32_0 = arith.constant 0 : i32
    %c0_i32_1 = arith.constant 0 : i32
    return %c0_i32, %c0_i32_0 : i32, i32
  }
  func.func @transform_2(%arg0: i32) -> (i32, i32) {
    %c0_i32 = arith.constant 0 : i32
    %c0_i32_0 = arith.constant 0 : i32
    %c0_i32_1 = arith.constant 0 : i32
    return %c0_i32, %c0_i32_0 : i32, i32
  }
  func.func @transform_3(%arg0: i32) -> (i32, i32) {
    %c0_i32 = arith.constant 0 : i32
    %c0_i32_0 = arith.constant 0 : i32
    %c0_i32_1 = arith.constant 0 : i32
    return %c0_i32, %c0_i32_0 : i32, i32
  }
  func.func @transform_4(%arg0: i32) -> (i32, i32) {
    %c0_i32 = arith.constant 0 : i32
    %c0_i32_0 = arith.constant 0 : i32
    %c0_i32_1 = arith.constant 0 : i32
    return %c0_i32, %c0_i32_0 : i32, i32
  }
  func.func @transform_5(%arg0: i32) -> (i32, i32) {
    %c0_i32 = arith.constant 0 : i32
    %c0_i32_0 = arith.constant 0 : i32
    %c0_i32_1 = arith.constant 0 : i32
    return %c0_i32, %c0_i32_0 : i32, i32
  }
  func.func @transform_6(%arg0: i32) -> (i32, i32) {
    %c0_i32 = arith.constant 0 : i32
    %c0_i32_0 = arith.constant 0 : i32
    %c0_i32_1 = arith.constant 0 : i32
    return %c0_i32, %c0_i32_0 : i32, i32
  }
  func.func @transform_7(%arg0: i32) -> (i32, i32) {
    %c0_i32 = arith.constant 0 : i32
    %c0_i32_0 = arith.constant 0 : i32
    %c0_i32_1 = arith.constant 0 : i32
    return %c0_i32, %c0_i32_0 : i32, i32
  }
  func.func @transform_8(%arg0: i32) -> (i32, i32) {
    %c0_i32 = arith.constant 0 : i32
    %c0_i32_0 = arith.constant 0 : i32
    %c0_i32_1 = arith.constant 0 : i32
    return %c0_i32, %c0_i32_0 : i32, i32
  }
  func.func @transform_9(%arg0: i32) -> (i32, i32) {
    %c0_i32 = arith.constant 0 : i32
    %c0_i32_0 = arith.constant 0 : i32
    %c0_i32_1 = arith.constant 0 : i32
    return %c0_i32, %c0_i32_0 : i32, i32
  }
  func.func @transform_10(%arg0: i32) -> (i32, i32) {
    %c0_i32 = arith.constant 0 : i32
    %c0_i32_0 = arith.constant 0 : i32
    %c0_i32_1 = arith.constant 0 : i32
    return %c0_i32, %c0_i32_0 : i32, i32
  }
  func.func @transform_11(%arg0: i32) -> (i32, i32) {
    %c0_i32 = arith.constant 0 : i32
    %c0_i32_0 = arith.constant 0 : i32
    %c0_i32_1 = arith.constant 0 : i32
    return %c0_i32, %c0_i32_0 : i32, i32
  }
  func.func @transform_12(%arg0: i32) -> (i32, i32) {
    %c0_i32 = arith.constant 0 : i32
    %c0_i32_0 = arith.constant 0 : i32
    %c0_i32_1 = arith.constant 0 : i32
    return %c0_i32, %c0_i32_0 : i32, i32
  }
  func.func @transform_13(%arg0: i32) -> (i32, i32) {
    %c0_i32 = arith.constant 0 : i32
    %c0_i32_0 = arith.constant 0 : i32
    %c0_i32_1 = arith.constant 0 : i32
    return %c0_i32, %c0_i32_0 : i32, i32
  }
}

</mosaic_0001>

<llo_original>
// kernel: tile.8
$region0: #{tile.8}
  #allocation0 [shape = 's32[1]{0}', space=sflag, size = 0x4, scoped, tag = 'scoped memory for tile.8']
  %s0 = inlined_call_operand.vmem [shape: f32[8], index: 0, kind: input, shape index: {}]
  %s1 = inlined_call_operand.vmem [shape: f32[9,8], index: 1, kind: output, shape index: {}]
  // Predicated region
  $region2: #{tile.8} parent=0 // pred_check
    _
  $region3: #{tile.8} parent=0 // pred_check_branch
    %3 = sbr.rel (0) target = $region5
  $region4: #{tile.8} parent=0 // pred_region
    _
  $region5: #{tile.8} parent=0 // pred_fallthru
    _
  %v4 = vld [vmem:[%s0] ss:$0 sm:$0xff]
  %5 = vst [vmem:[%s1] sm:$0xff] %v4
  %s6 = scalar_lea.vmem %s1, 8
  %7 = vst [vmem:[%s6] sm:$0xff] %v4

// kernel: tile.9
$region0: #{tile.9}
  %s0 = inlined_call_operand.vmem [shape: f32[9,8], index: 0, kind: input, shape index: {}]
  %s1 = inlined_call_operand.vmem [shape: f32[1,72], index: 1, kind: output, shape index: {}]
  $region1: #{tile.9} parent=0
    #allocation0 [shape = 'u8[4096]{0}', space=vmem, size = 0x1000, scoped, tag = 'scoped mem for output reshape']
    %v2 = vld [vmem:[%s0] sm:$0x1]
    %vm3 = vcmask 64512
    %4 = vst.msk [vmem:[#allocation0] sm:$0x1] %vm3, %v2
    %s5 = scalar_lea.vmem %s0, 8
    %v6 = vld [vmem:[%s5] sm:$0x1]
    %7 = vrot.lane.b32.xlu0 %v6, 64
    %v8 = vpop.permute.xlu0 %7
    %vm9 = vcmask 589312
    %10 = vst.msk [vmem:[#allocation0] sm:$0x1] %vm9, %v8
    %s11 = scalar_lea.vmem %s0, 7
    %v12 = vld [vmem:[%s11] sm:$0x1]
    %13 = vrot.lane.b32.xlu0 %v12, 56
    %v14 = vpop.permute.xlu0 %13
    %vm15 = vcmask 523712
    %16 = vst.msk [vmem:[#allocation0] sm:$0x1] %vm15, %v14
    %s17 = scalar_lea.vmem %s0, 6
    %v18 = vld [vmem:[%s17] sm:$0x1]
    %19 = vrot.lane.b32.xlu0 %v18, 48
    %v20 = vpop.permute.xlu0 %19
    %vm21 = vcmask 458112
    %22 = vst.msk [vmem:[#allocation0] sm:$0x1] %vm21, %v20
    %s23 = scalar_lea.vmem %s0, 5
    %v24 = vld [vmem:[%s23] sm:$0x1]
    %25 = vrot.lane.b32.xlu0 %v24, 40
    %v26 = vpop.permute.xlu0 %25
    %vm27 = vcmask 392512
    %28 = vst.msk [vmem:[#allocation0] sm:$0x1] %vm27, %v26
    %s29 = scalar_lea.vmem %s0, 4
    %v30 = vld [vmem:[%s29] sm:$0x1]
    %31 = vrot.lane.b32.xlu0 %v30, 32
    %v32 = vpop.permute.xlu0 %31
    %vm33 = vcmask 326912
    %34 = vst.msk [vmem:[#allocation0] sm:$0x1] %vm33, %v32
    %s35 = scalar_lea.vmem %s0, 3
    %v36 = vld [vmem:[%s35] sm:$0x1]
    %37 = vrot.lane.b32.xlu0 %v36, 24
    %v38 = vpop.permute.xlu0 %37
    %vm39 = vcmask 261312
    %40 = vst.msk [vmem:[#allocation0] sm:$0x1] %vm39, %v38
    %s41 = scalar_lea.vmem %s0, 2
    %v42 = vld [vmem:[%s41] sm:$0x1]
    %43 = vrot.lane.b32.xlu0 %v42, 16
    %v44 = vpop.permute.xlu0 %43
    %vm45 = vcmask 195712
    %46 = vst.msk [vmem:[#allocation0] sm:$0x1] %vm45, %v44
    %s47 = scalar_lea.vmem %s0, 1
    %v48 = vld [vmem:[%s47] sm:$0x1]
    %49 = vrot.lane.b32.xlu0 %v48, 8
    %v50 = vpop.permute.xlu0 %49
    %vm51 = vcmask 130112
    %52 = vst.msk [vmem:[#allocation0] sm:$0x1] %vm51, %v50
    %s54 = sshll.u32 1, 1
    %s55 = ssub.s32 %s54, 1
    %v57 = vld [vmem:[#allocation0] sm:%s55]
    %s58 = sshll.u32 1, 1
    %s59 = ssub.s32 %s58, 1
    %60 = vst [vmem:[%s1] sm:%s59] %v57

// kernel: cnn3_fc3_forward.1
$region0: #{cnn3_fc3_forward.1}
  #allocation0 [shape = 'u32[]', space=smem, size = 0x4, offset = 0x4, fixed_abs, tag = 'smem constant byte address 0x4 - core index']
  #allocation1 [shape = 'u32[144,128]{1,0:T(1,128)}', space=vmem, size = 0x12000, scoped, tag = 'internal scratch']
  #allocation2 [shape = 'f32[24,144]{1,0:T(8,128)}', space=vmem, size = 0x6000, scoped, tag = 'scratch operand']
  %s0 = inlined_call_operand.vmem [shape: bf16[216,576], index: 0, kind: input, shape index: {}]
  %s1 = inlined_call_operand.vmem [shape: bf16[576,72], index: 1, kind: input, shape index: {}]
  %s2 = inlined_call_operand.vmem [shape: f32[1,72], index: 2, kind: input, shape index: {}]
  %s3 = inlined_call_operand.vmem [shape: bf16[72,16], index: 3, kind: input, shape index: {}]
  %s4 = inlined_call_operand.vmem [shape: f32[1,16], index: 4, kind: input, shape index: {}]
  %s5 = inlined_call_operand.vmem [shape: bf16[144,32], index: 5, kind: input, shape index: {}]
  %s6 = inlined_call_operand.vmem [shape: f32[1,32], index: 6, kind: input, shape index: {}]
  %s7 = inlined_call_operand.vmem [shape: bf16[32,512], index: 7, kind: input, shape index: {}]
  %s8 = inlined_call_operand.vmem [shape: f32[1,512], index: 8, kind: input, shape index: {}]
  %s9 = inlined_call_operand.vmem [shape: bf16[512,64], index: 9, kind: input, shape index: {}]
  %s10 = inlined_call_operand.vmem [shape: f32[1,64], index: 10, kind: input, shape index: {}]
  %s11 = inlined_call_operand.vmem [shape: bf16[64,4], index: 11, kind: input, shape index: {}]
  %s12 = inlined_call_operand.vmem [shape: f32[1,4], index: 12, kind: input, shape index: {}]
  %s13 = inlined_call_operand.hbm [shape: f32[2,4], index: 13, kind: output, shape index: {}]
  %s14 = sld [smem:[#allocation0]]
  $region62: #{cnn3_fc3_forward.1} parent=0
    _
  %s16 = ssub.s32 1, %s14
  %s17 = scalar_select 0, %s16, %s14
  $region1: #{cnn3_fc3_forward.1} parent=0
    #allocation3 [shape = 'u8[1024]{0}', space=vmem, size = 0x400, scoped, tag = 'output window, operand 0, single buffered']
    #allocation4 [shape = 's32[1]{0}', space=sflag, size = 0x4, scoped, tag = 'scoped memory for cnn3_fc3_forward.1']
    %18 = vsyncpa [#allocation4], 0
    // Predicated region
    $region2: #{cnn3_fc3_forward.1} parent=1 // pred_check
      _
    $region3: #{cnn3_fc3_forward.1} parent=1 // pred_check_branch
      %20 = sbr.rel (0) target = $region5
    $region4: #{cnn3_fc3_forward.1} parent=1 // pred_region
      _
    $region5: #{cnn3_fc3_forward.1} parent=1 // pred_fallthru
      _
    // Predicated region
    $region6: #{cnn3_fc3_forward.1} parent=1 // pred_check
      _
    $region7: #{cnn3_fc3_forward.1} parent=1 // pred_check_branch
      %22 = sbr.rel (0) target = $region9
    $region8: #{cnn3_fc3_forward.1} parent=1 // pred_region
      _
    $region9: #{cnn3_fc3_forward.1} parent=1 // pred_fallthru
      _
    // Predicated region
    $region10: #{cnn3_fc3_forward.1} parent=1 // pred_check
      _
    $region11: #{cnn3_fc3_forward.1} parent=1 // pred_check_branch
      %24 = sbr.rel (0) target = $region13
    $region12: #{cnn3_fc3_forward.1} parent=1 // pred_region
      _
    $region13: #{cnn3_fc3_forward.1} parent=1 // pred_fallthru
      _
    // Predicated region
    $region14: #{cnn3_fc3_forward.1} parent=1 // pred_check
      _
    $region15: #{cnn3_fc3_forward.1} parent=1 // pred_check_branch
      %26 = sbr.rel (0) target = $region17
    $region16: #{cnn3_fc3_forward.1} parent=1 // pred_region
      _
    $region17: #{cnn3_fc3_forward.1} parent=1 // pred_fallthru
      _
    // Predicated region
    $region18: #{cnn3_fc3_forward.1} parent=1 // pred_check
      _
    $region19: #{cnn3_fc3_forward.1} parent=1 // pred_check_branch
      %28 = sbr.rel (0) target = $region21
    $region20: #{cnn3_fc3_forward.1} parent=1 // pred_region
      _
    $region21: #{cnn3_fc3_forward.1} parent=1 // pred_fallthru
      _
    // Predicated region
    $region22: #{cnn3_fc3_forward.1} parent=1 // pred_check
      _
    $region23: #{cnn3_fc3_forward.1} parent=1 // pred_check_branch
      %30 = sbr.rel (0) target = $region25
    $region24: #{cnn3_fc3_forward.1} parent=1 // pred_region
      _
    $region25: #{cnn3_fc3_forward.1} parent=1 // pred_fallthru
      _
    // Predicated region
    $region26: #{cnn3_fc3_forward.1} parent=1 // pred_check
      _
    $region27: #{cnn3_fc3_forward.1} parent=1 // pred_check_branch
      %32 = sbr.rel (0) target = $region29
    $region28: #{cnn3_fc3_forward.1} parent=1 // pred_region
      _
    $region29: #{cnn3_fc3_forward.1} parent=1 // pred_fallthru
      _
    // Predicated region
    $region30: #{cnn3_fc3_forward.1} parent=1 // pred_check
      _
    $region31: #{cnn3_fc3_forward.1} parent=1 // pred_check_branch
      %34 = sbr.rel (0) target = $region33
    $region32: #{cnn3_fc3_forward.1} parent=1 // pred_region
      _
    $region33: #{cnn3_fc3_forward.1} parent=1 // pred_fallthru
      _
    // Predicated region
    $region34: #{cnn3_fc3_forward.1} parent=1 // pred_check
      _
    $region35: #{cnn3_fc3_forward.1} parent=1 // pred_check_branch
      %36 = sbr.rel (0) target = $region37
    $region36: #{cnn3_fc3_forward.1} parent=1 // pred_region
      _
    $region37: #{cnn3_fc3_forward.1} parent=1 // pred_fallthru
      _
    // Predicated region
    $region38: #{cnn3_fc3_forward.1} parent=1 // pred_check
      _
    $region39: #{cnn3_fc3_forward.1} parent=1 // pred_check_branch
      %38 = sbr.rel (0) target = $region41
    $region40: #{cnn3_fc3_forward.1} parent=1 // pred_region
      _
    $region41: #{cnn3_fc3_forward.1} parent=1 // pred_fallthru
      _
    // Predicated region
    $region42: #{cnn3_fc3_forward.1} parent=1 // pred_check
      _
    $region43: #{cnn3_fc3_forward.1} parent=1 // pred_check_branch
      %40 = sbr.rel (0) target = $region45
    $region44: #{cnn3_fc3_forward.1} parent=1 // pred_region
      _
    $region45: #{cnn3_fc3_forward.1} parent=1 // pred_fallthru
      _
    // Predicated region
    $region46: #{cnn3_fc3_forward.1} parent=1 // pred_check
      _
    $region47: #{cnn3_fc3_forward.1} parent=1 // pred_check_branch
      %42 = sbr.rel (0) target = $region49
    $region48: #{cnn3_fc3_forward.1} parent=1 // pred_region
      _
    $region49: #{cnn3_fc3_forward.1} parent=1 // pred_fallthru
      _
    // Predicated region
    $region50: #{cnn3_fc3_forward.1} parent=1 // pred_check
      _
    $region51: #{cnn3_fc3_forward.1} parent=1 // pred_check_branch
      %44 = sbr.rel (0) target = $region53
    $region52: #{cnn3_fc3_forward.1} parent=1 // pred_region
      _
    $region53: #{cnn3_fc3_forward.1} parent=1 // pred_fallthru
      _
    %v46 = vld [vmem:[%s0] sm:$0xff]
    %v47 = vld [vmem:[%s0 + $0x8] sm:$0xff]
    %v48 = vld [vmem:[%s0 + $0x10] sm:$0xf]
    %v49 = vld [vmem:[%s0 + $0x14] sm:$0xff]
    %v50 = vld [vmem:[%s0 + $0x1c] sm:$0xff]
    %v51 = vld [vmem:[%s0 + $0x24] sm:$0xf]
    %v52 = vld [vmem:[%s0 + $0x28] sm:$0xff]
    %v53 = vld [vmem:[%s0 + $0x30] sm:$0xff]
    %v54 = vld [vmem:[%s0 + $0x38] sm:$0xf]
    %v55 = vld [vmem:[%s0 + $0x3c] sm:$0xff]
    %v56 = vld [vmem:[%s0 + $0x44] sm:$0xff]
    %v57 = vld [vmem:[%s0 + $0x4c] sm:$0xf]
    %v58 = vld [vmem:[%s0 + $0x50] sm:$0xff]
    %v59 = vld [vmem:[%s0 + $0x58] sm:$0xff]
    %v60 = vld [vmem:[%s0 + $0x60] sm:$0xf]
    %v61 = vld [vmem:[%s0 + $0x64] sm:$0xff]
    %v62 = vld [vmem:[%s0 + $0x6c] sm:$0xff]
    %v63 = vld [vmem:[%s0 + $0x74] sm:$0xf]
    %v64 = vld [vmem:[%s0 + $0x78] sm:$0xff]
    %v65 = vld [vmem:[%s0 + $0x80] sm:$0xff]
    %v66 = vld [vmem:[%s0 + $0x88] sm:$0xf]
    %v67 = vld [vmem:[%s0 + $0x8c] sm:$0xff]
    %v68 = vld [vmem:[%s0 + $0x94] sm:$0xff]
    %v69 = vld [vmem:[%s0 + $0x9c] sm:$0xf]
    %v70 = vld [vmem:[%s0 + $0xa0] sm:$0xff]
    %v71 = vld [vmem:[%s0 + $0xa8] sm:$0xff]
    %v72 = vld [vmem:[%s0 + $0xb0] sm:$0xf]
    %v73 = vld [vmem:[%s0 + $0xb4] sm:$0xff]
    %v74 = vld [vmem:[%s0 + $0xbc] sm:$0xff]
    %v75 = vld [vmem:[%s0 + $0xc4] sm:$0xf]
    %v76 = vld [vmem:[%s0 + $0xc8] sm:$0xff]
    %v77 = vld [vmem:[%s0 + $0xd0] sm:$0xff]
    %v78 = vld [vmem:[%s0 + $0xd8] sm:$0xf]
    %v79 = vld [vmem:[%s0 + $0xdc] sm:$0xff]
    %v80 = vld [vmem:[%s0 + $0xe4] sm:$0xff]
    %v81 = vld [vmem:[%s0 + $0xec] sm:$0xf]
    %v82 = vld [vmem:[%s0 + $0xf0] sm:$0xff]
    %v83 = vld [vmem:[%s0 + $0xf8] sm:$0xff]
    %v84 = vld [vmem:[%s0 + $0x100] sm:$0xf]
    %v85 = vld [vmem:[%s0 + $0x104] sm:$0xff]
    %v86 = vld [vmem:[%s0 + $0x10c] sm:$0xff]
    %v87 = vld [vmem:[%s0 + $0x114] sm:$0xf]
    %v88 = vld [vmem:[%s0 + $0x118] sm:$0xff]
    %v89 = vld [vmem:[%s0 + $0x120] sm:$0xff]
    %v90 = vld [vmem:[%s0 + $0x128] sm:$0xf]
    %v91 = vld [vmem:[%s0 + $0x12c] sm:$0xff]
    %v92 = vld [vmem:[%s0 + $0x134] sm:$0xff]
    %v93 = vld [vmem:[%s0 + $0x13c] sm:$0xf]
    %v94 = vld [vmem:[%s0 + $0x140] sm:$0xff]
    %v95 = vld [vmem:[%s0 + $0x148] sm:$0xff]
    %v96 = vld [vmem:[%s0 + $0x150] sm:$0xf]
    %v97 = vld [vmem:[%s0 + $0x154] sm:$0xff]
    %v98 = vld [vmem:[%s0 + $0x15c] sm:$0xff]
    %v99 = vld [vmem:[%s0 + $0x164] sm:$0xf]
    %v100 = vld [vmem:[%s0 + $0x168] sm:$0xff]
    %v101 = vld [vmem:[%s0 + $0x170] sm:$0xff]
    %v102 = vld [vmem:[%s0 + $0x178] sm:$0xf]
    %v103 = vld [vmem:[%s0 + $0x17c] sm:$0xff]
    %v104 = vld [vmem:[%s0 + $0x184] sm:$0xff]
    %v105 = vld [vmem:[%s0 + $0x18c] sm:$0xf]
    %v106 = vld [vmem:[%s0 + $0x190] sm:$0xff]
    %v107 = vld [vmem:[%s0 + $0x198] sm:$0xff]
    %v108 = vld [vmem:[%s0 + $0x1a0] sm:$0xf]
    %v109 = vld [vmem:[%s0 + $0x1a4] sm:$0xff]
    %v110 = vld [vmem:[%s0 + $0x1ac] sm:$0xff]
    %v111 = vld [vmem:[%s0 + $0x1b4] sm:$0xf]
    %v112 = vld [vmem:[%s0 + $0x1b8] sm:$0xff]
    %v113 = vld [vmem:[%s0 + $0x1c0] sm:$0xff]
    %v114 = vld [vmem:[%s0 + $0x1c8] sm:$0xf]
    %v115 = vld [vmem:[%s0 + $0x1cc] sm:$0xff]
    %v116 = vld [vmem:[%s0 + $0x1d4] sm:$0xff]
    %v117 = vld [vmem:[%s0 + $0x1dc] sm:$0xf]
    %v118 = vld [vmem:[%s0 + $0x1e0] sm:$0xff]
    %v119 = vld [vmem:[%s0 + $0x1e8] sm:$0xff]
    %v120 = vld [vmem:[%s0 + $0x1f0] sm:$0xf]
    %v121 = vld [vmem:[%s0 + $0x1f4] sm:$0xff]
    %v122 = vld [vmem:[%s0 + $0x1fc] sm:$0xff]
    %v123 = vld [vmem:[%s0 + $0x204] sm:$0xf]
    %v124 = vld [vmem:[%s0 + $0x208] sm:$0xff]
    %v125 = vld [vmem:[%s0 + $0x210] sm:$0xff]
    %v126 = vld [vmem:[%s0 + $0x218] sm:$0xf]
    %v127 = vld [vmem:[%s1] sm:$0xf]
    %v128 = vld [vmem:[%s1 + $0x4] sm:$0xf]
    %v129 = vld [vmem:[%s1 + $0x8] sm:$0xf]
    %v130 = vld [vmem:[%s1 + $0xc] sm:$0xf]
    %v131 = vld [vmem:[%s1 + $0x10] sm:$0xf]
    %v132 = vld [vmem:[%s1 + $0x14] sm:$0xf]
    %v133 = vld [vmem:[%s1 + $0x18] sm:$0xf]
    %v134 = vld [vmem:[%s1 + $0x1c] sm:$0xf]
    %v135 = vld [vmem:[%s1 + $0x20] sm:$0xf]
    %v136 = vld [vmem:[%s1 + $0x24] sm:$0xf]
    %v137 = vld [vmem:[%s1 + $0x28] sm:$0xf]
    %v138 = vld [vmem:[%s1 + $0x2c] sm:$0xf]
    %v139 = vld [vmem:[%s1 + $0x30] sm:$0xf]
    %v140 = vld [vmem:[%s1 + $0x34] sm:$0xf]
    %v141 = vld [vmem:[%s1 + $0x38] sm:$0xf]
    %v142 = vld [vmem:[%s1 + $0x3c] sm:$0xf]
    %v143 = vld [vmem:[%s1 + $0x40] sm:$0xf]
    %v144 = vld [vmem:[%s1 + $0x44] sm:$0xf]
    %v145 = vld [vmem:[%s1 + $0x48] sm:$0xf]
    %v146 = vld [vmem:[%s1 + $0x4c] sm:$0xf]
    %v147 = vld [vmem:[%s1 + $0x50] sm:$0xf]
    %v148 = vld [vmem:[%s1 + $0x54] sm:$0xf]
    %v149 = vld [vmem:[%s1 + $0x58] sm:$0xf]
    %v150 = vld [vmem:[%s1 + $0x5c] sm:$0xf]
    %v151 = vld [vmem:[%s1 + $0x60] sm:$0xf]
    %v152 = vld [vmem:[%s1 + $0x64] sm:$0xf]
    %v153 = vld [vmem:[%s1 + $0x68] sm:$0xf]
    %v154 = vld [vmem:[%s1 + $0x6c] sm:$0xf]
    %v155 = vld [vmem:[%s1 + $0x70] sm:$0xf]
    %v156 = vld [vmem:[%s1 + $0x74] sm:$0xf]
    %v157 = vld [vmem:[%s1 + $0x78] sm:$0xf]
    %v158 = vld [vmem:[%s1 + $0x7c] sm:$0xf]
    %v159 = vld [vmem:[%s1 + $0x80] sm:$0xf]
    %v160 = vld [vmem:[%s1 + $0x84] sm:$0xf]
    %v161 = vld [vmem:[%s1 + $0x88] sm:$0xf]
    %v162 = vld [vmem:[%s1 + $0x8c] sm:$0xf]
    %v163 = vld [vmem:[%s1 + $0x90] sm:$0xf]
    %v164 = vld [vmem:[%s1 + $0x94] sm:$0xf]
    %v165 = vld [vmem:[%s1 + $0x98] sm:$0xf]
    %v166 = vld [vmem:[%s1 + $0x9c] sm:$0xf]
    %v167 = vld [vmem:[%s1 + $0xa0] sm:$0xf]
    %v168 = vld [vmem:[%s1 + $0xa4] sm:$0xf]
    %v169 = vld [vmem:[%s1 + $0xa8] sm:$0xf]
    %v170 = vld [vmem:[%s1 + $0xac] sm:$0xf]
    %v171 = vld [vmem:[%s1 + $0xb0] sm:$0xf]
    %v172 = vld [vmem:[%s1 + $0xb4] sm:$0xf]
    %v173 = vld [vmem:[%s1 + $0xb8] sm:$0xf]
    %v174 = vld [vmem:[%s1 + $0xbc] sm:$0xf]
    %v175 = vld [vmem:[%s1 + $0xc0] sm:$0xf]
    %v176 = vld [vmem:[%s1 + $0xc4] sm:$0xf]
    %v177 = vld [vmem:[%s1 + $0xc8] sm:$0xf]
    %v178 = vld [vmem:[%s1 + $0xcc] sm:$0xf]
    %v179 = vld [vmem:[%s1 + $0xd0] sm:$0xf]
    %v180 = vld [vmem:[%s1 + $0xd4] sm:$0xf]
    %v181 = vld [vmem:[%s1 + $0xd8] sm:$0xf]
    %v182 = vld [vmem:[%s1 + $0xdc] sm:$0xf]
    %v183 = vld [vmem:[%s1 + $0xe0] sm:$0xf]
    %v184 = vld [vmem:[%s1 + $0xe4] sm:$0xf]
    %v185 = vld [vmem:[%s1 + $0xe8] sm:$0xf]
    %v186 = vld [vmem:[%s1 + $0xec] sm:$0xf]
    %v187 = vld [vmem:[%s1 + $0xf0] sm:$0xf]
    %v188 = vld [vmem:[%s1 + $0xf4] sm:$0xf]
    %v189 = vld [vmem:[%s1 + $0xf8] sm:$0xf]
    %v190 = vld [vmem:[%s1 + $0xfc] sm:$0xf]
    %v191 = vld [vmem:[%s1 + $0x100] sm:$0xf]
    %v192 = vld [vmem:[%s1 + $0x104] sm:$0xf]
    %v193 = vld [vmem:[%s1 + $0x108] sm:$0xf]
    %v194 = vld [vmem:[%s1 + $0x10c] sm:$0xf]
    %v195 = vld [vmem:[%s1 + $0x110] sm:$0xf]
    %v196 = vld [vmem:[%s1 + $0x114] sm:$0xf]
    %v197 = vld [vmem:[%s1 + $0x118] sm:$0xf]
    %v198 = vld [vmem:[%s1 + $0x11c] sm:$0xf]
    %v199 = vld [vmem:[%s2] sm:$0x1]
    %v201 = vlaneseq
    %v202 = vshrl.u32 %v201, 7
    %v203 = vsub.s32 0, %v202
    %v204 = vrot.slane %v199, %v203
    %v287 = vunpack.c.l.b16 %v46
    %v288 = vunpack.c.h.b16 %v46
    %v289 = vunpack.c.l.b16 %v47
    %v290 = vunpack.c.h.b16 %v47
    %v291 = vunpack.c.l.b16 %v48
    %v292 = vunpack.c.l.b16 %v49
    %v293 = vunpack.c.h.b16 %v49
    %v294 = vunpack.c.l.b16 %v50
    %v295 = vunpack.c.h.b16 %v50
    %v296 = vunpack.c.l.b16 %v51
    %v297 = vunpack.c.l.b16 %v52
    %v298 = vunpack.c.h.b16 %v52
    %v299 = vunpack.c.l.b16 %v53
    %v300 = vunpack.c.h.b16 %v53
    %v301 = vunpack.c.l.b16 %v54
    %v302 = vunpack.c.l.b16 %v55
    %v303 = vunpack.c.h.b16 %v55
    %v304 = vunpack.c.l.b16 %v56
    %v305 = vunpack.c.h.b16 %v56
    %v306 = vunpack.c.l.b16 %v57
    %v307 = vunpack.c.l.b16 %v58
    %v308 = vunpack.c.h.b16 %v58
    %v309 = vunpack.c.l.b16 %v59
    %v310 = vunpack.c.h.b16 %v59
    %v311 = vunpack.c.l.b16 %v60
    %v312 = vunpack.c.l.b16 %v61
    %v313 = vunpack.c.h.b16 %v61
    %v314 = vunpack.c.l.b16 %v62
    %v315 = vunpack.c.h.b16 %v62
    %v316 = vunpack.c.l.b16 %v63
    %v317 = vunpack.c.l.b16 %v64
    %v318 = vunpack.c.h.b16 %v64
    %v319 = vunpack.c.l.b16 %v65
    %v320 = vunpack.c.h.b16 %v65
    %v321 = vunpack.c.l.b16 %v66
    %v322 = vunpack.c.l.b16 %v67
    %v323 = vunpack.c.h.b16 %v67
    %v324 = vunpack.c.l.b16 %v68
    %v325 = vunpack.c.h.b16 %v68
    %v326 = vunpack.c.l.b16 %v69
    %v327 = vunpack.c.l.b16 %v70
    %v328 = vunpack.c.h.b16 %v70
    %v329 = vunpack.c.l.b16 %v71
    %v330 = vunpack.c.h.b16 %v71
    %v331 = vunpack.c.l.b16 %v72
    %v332 = vunpack.c.l.b16 %v73
    %v333 = vunpack.c.h.b16 %v73
    %v334 = vunpack.c.l.b16 %v74
    %v335 = vunpack.c.h.b16 %v74
    %v336 = vunpack.c.l.b16 %v75
    %v337 = vunpack.c.l.b16 %v76
    %v338 = vunpack.c.h.b16 %v76
    %v339 = vunpack.c.l.b16 %v77
    %v340 = vunpack.c.h.b16 %v77
    %v341 = vunpack.c.l.b16 %v78
    %v342 = vunpack.c.l.b16 %v79
    %v343 = vunpack.c.h.b16 %v79
    %v344 = vunpack.c.l.b16 %v80
    %v345 = vunpack.c.h.b16 %v80
    %v346 = vunpack.c.l.b16 %v81
    %v347 = vunpack.c.l.b16 %v82
    %v348 = vunpack.c.h.b16 %v82
    %v349 = vunpack.c.l.b16 %v83
    %v350 = vunpack.c.h.b16 %v83
    %v351 = vunpack.c.l.b16 %v84
    %v352 = vunpack.c.l.b16 %v85
    %v353 = vunpack.c.h.b16 %v85
    %v354 = vunpack.c.l.b16 %v86
    %v355 = vunpack.c.h.b16 %v86
    %v356 = vunpack.c.l.b16 %v87
    %v357 = vunpack.c.l.b16 %v88
    %v358 = vunpack.c.h.b16 %v88
    %v359 = vunpack.c.l.b16 %v89
    %v360 = vunpack.c.h.b16 %v89
    %v361 = vunpack.c.l.b16 %v90
    %v362 = vunpack.c.l.b16 %v91
    %v363 = vunpack.c.h.b16 %v91
    %v364 = vunpack.c.l.b16 %v92
    %v365 = vunpack.c.h.b16 %v92
    %v366 = vunpack.c.l.b16 %v93
    %v367 = vunpack.c.l.b16 %v94
    %v368 = vunpack.c.h.b16 %v94
    %v369 = vunpack.c.l.b16 %v95
    %v370 = vunpack.c.h.b16 %v95
    %v371 = vunpack.c.l.b16 %v96
    %v372 = vunpack.c.l.b16 %v97
    %v373 = vunpack.c.h.b16 %v97
    %v374 = vunpack.c.l.b16 %v98
    %v375 = vunpack.c.h.b16 %v98
    %v376 = vunpack.c.l.b16 %v99
    %v377 = vunpack.c.l.b16 %v100
    %v378 = vunpack.c.h.b16 %v100
    %v379 = vunpack.c.l.b16 %v101
    %v380 = vunpack.c.h.b16 %v101
    %v381 = vunpack.c.l.b16 %v102
    %v382 = vunpack.c.l.b16 %v103
    %v383 = vunpack.c.h.b16 %v103
    %v384 = vunpack.c.l.b16 %v104
    %v385 = vunpack.c.h.b16 %v104
    %v386 = vunpack.c.l.b16 %v105
    %v387 = vunpack.c.l.b16 %v106
    %v388 = vunpack.c.h.b16 %v106
    %v389 = vunpack.c.l.b16 %v107
    %v390 = vunpack.c.h.b16 %v107
    %v391 = vunpack.c.l.b16 %v108
    %v392 = vunpack.c.l.b16 %v109
    %v393 = vunpack.c.h.b16 %v109
    %v394 = vunpack.c.l.b16 %v110
    %v395 = vunpack.c.h.b16 %v110
    %v396 = vunpack.c.l.b16 %v111
    %v397 = vunpack.c.l.b16 %v112
    %v398 = vunpack.c.h.b16 %v112
    %v399 = vunpack.c.l.b16 %v113
    %v400 = vunpack.c.h.b16 %v113
    %v401 = vunpack.c.l.b16 %v114
    %v402 = vunpack.c.l.b16 %v115
    %v403 = vunpack.c.h.b16 %v115
    %v404 = vunpack.c.l.b16 %v116
    %v405 = vunpack.c.h.b16 %v116
    %v406 = vunpack.c.l.b16 %v117
    %v407 = vunpack.c.l.b16 %v118
    %v408 = vunpack.c.h.b16 %v118
    %v409 = vunpack.c.l.b16 %v119
    %v410 = vunpack.c.h.b16 %v119
    %v411 = vunpack.c.l.b16 %v120
    %v412 = vunpack.c.l.b16 %v121
    %v413 = vunpack.c.h.b16 %v121
    %v414 = vunpack.c.l.b16 %v122
    %v415 = vunpack.c.h.b16 %v122
    %v416 = vunpack.c.l.b16 %v123
    %v417 = vunpack.c.l.b16 %v124
    %v418 = vunpack.c.h.b16 %v124
    %v419 = vunpack.c.l.b16 %v125
    %v420 = vunpack.c.h.b16 %v125
    %v421 = vunpack.c.l.b16 %v126
    %v422 = vpack.c.b16 %v292, %v287
    %v423 = vpack.c.b16 %v293, %v288
    %v424 = vpack.c.b16 %v294, %v289
    %v425 = vpack.c.b16 %v295, %v290
    %v426 = vpack.c.b16 %v296, %v291
    %v427 = vpack.c.b16 %v302, %v297
    %v428 = vpack.c.b16 %v303, %v298
    %v429 = vpack.c.b16 %v304, %v299
    %v430 = vpack.c.b16 %v305, %v300
    %v431 = vpack.c.b16 %v306, %v301
    %v432 = vpack.c.b16 %v312, %v307
    %v433 = vpack.c.b16 %v313, %v308
    %v434 = vpack.c.b16 %v314, %v309
    %v435 = vpack.c.b16 %v315, %v310
    %v436 = vpack.c.b16 %v316, %v311
    %v437 = vpack.c.b16 %v322, %v317
    %v438 = vpack.c.b16 %v323, %v318
    %v439 = vpack.c.b16 %v324, %v319
    %v440 = vpack.c.b16 %v325, %v320
    %v441 = vpack.c.b16 %v326, %v321
    %v442 = vpack.c.b16 %v332, %v327
    %v443 = vpack.c.b16 %v333, %v328
    %v444 = vpack.c.b16 %v334, %v329
    %v445 = vpack.c.b16 %v335, %v330
    %v446 = vpack.c.b16 %v336, %v331
    %v447 = vpack.c.b16 %v342, %v337
    %v448 = vpack.c.b16 %v343, %v338
    %v449 = vpack.c.b16 %v344, %v339
    %v450 = vpack.c.b16 %v345, %v340
    %v451 = vpack.c.b16 %v346, %v341
    %v452 = vpack.c.b16 %v352, %v347
    %v453 = vpack.c.b16 %v353, %v348
    %v454 = vpack.c.b16 %v354, %v349
    %v455 = vpack.c.b16 %v355, %v350
    %v456 = vpack.c.b16 %v356, %v351
    %v457 = vpack.c.b16 %v362, %v357
    %v458 = vpack.c.b16 %v363, %v358
    %v459 = vpack.c.b16 %v364, %v359
    %v460 = vpack.c.b16 %v365, %v360
    %v461 = vpack.c.b16 %v366, %v361
    %v462 = vpack.c.b16 %v372, %v367
    %v463 = vpack.c.b16 %v373, %v368
    %v464 = vpack.c.b16 %v374, %v369
    %v465 = vpack.c.b16 %v375, %v370
    %v466 = vpack.c.b16 %v376, %v371
    %v467 = vpack.c.b16 %v382, %v377
    %v468 = vpack.c.b16 %v383, %v378
    %v469 = vpack.c.b16 %v384, %v379
    %v470 = vpack.c.b16 %v385, %v380
    %v471 = vpack.c.b16 %v386, %v381
    %v472 = vpack.c.b16 %v392, %v387
    %v473 = vpack.c.b16 %v393, %v388
    %v474 = vpack.c.b16 %v394, %v389
    %v475 = vpack.c.b16 %v395, %v390
    %v476 = vpack.c.b16 %v396, %v391
    %v477 = vpack.c.b16 %v402, %v397
    %v478 = vpack.c.b16 %v403, %v398
    %v479 = vpack.c.b16 %v404, %v399
    %v480 = vpack.c.b16 %v405, %v400
    %v481 = vpack.c.b16 %v406, %v401
    %v482 = vpack.c.b16 %v412, %v407
    %v483 = vpack.c.b16 %v413, %v408
    %v484 = vpack.c.b16 %v414, %v409
    %v485 = vpack.c.b16 %v415, %v410
    %v486 = vpack.c.b16 %v416, %v411
    %v487 = vpack.c.b16 %v417, %v417
    %v488 = vpack.c.b16 %v418, %v418
    %v489 = vpack.c.b16 %v419, %v419
    %v490 = vpack.c.b16 %v420, %v420
    %v491 = vpack.c.b16 %v421, %v421
    %v620 = vunpack.c.l.b16 %v127
    %v621 = vunpack.c.l.b16 %v128
    %v622 = vunpack.c.l.b16 %v129
    %v623 = vunpack.c.l.b16 %v130
    %v624 = vunpack.c.l.b16 %v131
    %v625 = vunpack.c.l.b16 %v132
    %v626 = vunpack.c.l.b16 %v133
    %v627 = vunpack.c.l.b16 %v134
    %v628 = vunpack.c.l.b16 %v135
    %v629 = vunpack.c.l.b16 %v136
    %v630 = vunpack.c.l.b16 %v137
    %v631 = vunpack.c.l.b16 %v138
    %v632 = vunpack.c.l.b16 %v139
    %v633 = vunpack.c.l.b16 %v140
    %v634 = vunpack.c.l.b16 %v141
    %v635 = vunpack.c.l.b16 %v142
    %v636 = vunpack.c.l.b16 %v143
    %v637 = vunpack.c.l.b16 %v144
    %v638 = vunpack.c.l.b16 %v145
    %v639 = vunpack.c.l.b16 %v146
    %v640 = vunpack.c.l.b16 %v147
    %v641 = vunpack.c.l.b16 %v148
    %v642 = vunpack.c.l.b16 %v149
    %v643 = vunpack.c.l.b16 %v150
    %v644 = vunpack.c.l.b16 %v151
    %v645 = vunpack.c.l.b16 %v152
    %v646 = vunpack.c.l.b16 %v153
    %v647 = vunpack.c.l.b16 %v154
    %v648 = vunpack.c.l.b16 %v155
    %v649 = vunpack.c.l.b16 %v156
    %v650 = vunpack.c.l.b16 %v157
    %v651 = vunpack.c.l.b16 %v158
    %v652 = vunpack.c.l.b16 %v159
    %v653 = vunpack.c.l.b16 %v160
    %v654 = vunpack.c.l.b16 %v161
    %v655 = vunpack.c.l.b16 %v162
    %v656 = vunpack.c.l.b16 %v163
    %v657 = vunpack.c.l.b16 %v164
    %v658 = vunpack.c.l.b16 %v165
    %v659 = vunpack.c.l.b16 %v166
    %v660 = vunpack.c.l.b16 %v167
    %v661 = vunpack.c.l.b16 %v168
    %v662 = vunpack.c.l.b16 %v169
    %v663 = vunpack.c.l.b16 %v170
    %v664 = vunpack.c.l.b16 %v171
    %v665 = vunpack.c.l.b16 %v172
    %v666 = vunpack.c.l.b16 %v173
    %v667 = vunpack.c.l.b16 %v174
    %v668 = vunpack.c.l.b16 %v175
    %v669 = vunpack.c.l.b16 %v176
    %v670 = vunpack.c.l.b16 %v177
    %v671 = vunpack.c.l.b16 %v178
    %v672 = vunpack.c.l.b16 %v179
    %v673 = vunpack.c.l.b16 %v180
    %v674 = vunpack.c.l.b16 %v181
    %v675 = vunpack.c.l.b16 %v182
    %v676 = vunpack.c.l.b16 %v183
    %v677 = vunpack.c.l.b16 %v184
    %v678 = vunpack.c.l.b16 %v185
    %v679 = vunpack.c.l.b16 %v186
    %v680 = vunpack.c.l.b16 %v187
    %v681 = vunpack.c.l.b16 %v188
    %v682 = vunpack.c.l.b16 %v189
    %v683 = vunpack.c.l.b16 %v190
    %v684 = vunpack.c.l.b16 %v191
    %v685 = vunpack.c.l.b16 %v192
    %v686 = vunpack.c.l.b16 %v193
    %v687 = vunpack.c.l.b16 %v194
    %v688 = vunpack.c.l.b16 %v195
    %v689 = vunpack.c.l.b16 %v196
    %v690 = vunpack.c.l.b16 %v197
    %v691 = vunpack.c.l.b16 %v198
    %v692 = vpack.c.b16 %v621, %v620
    %v693 = vpack.c.b16 %v623, %v622
    %v694 = vpack.c.b16 %v625, %v624
    %v695 = vpack.c.b16 %v627, %v626
    %v696 = vpack.c.b16 %v629, %v628
    %v697 = vpack.c.b16 %v631, %v630
    %v698 = vpack.c.b16 %v633, %v632
    %v699 = vpack.c.b16 %v635, %v634
    %v700 = vpack.c.b16 %v637, %v636
    %v701 = vpack.c.b16 %v639, %v638
    %v702 = vpack.c.b16 %v641, %v640
    %v703 = vpack.c.b16 %v643, %v642
    %v704 = vpack.c.b16 %v645, %v644
    %v705 = vpack.c.b16 %v647, %v646
    %v706 = vpack.c.b16 %v649, %v648
    %v707 = vpack.c.b16 %v651, %v650
    %v708 = vpack.c.b16 %v653, %v652
    %v709 = vpack.c.b16 %v655, %v654
    %v710 = vpack.c.b16 %v657, %v656
    %v711 = vpack.c.b16 %v659, %v658
    %v712 = vpack.c.b16 %v661, %v660
    %v713 = vpack.c.b16 %v663, %v662
    %v714 = vpack.c.b16 %v665, %v664
    %v715 = vpack.c.b16 %v667, %v666
    %v716 = vpack.c.b16 %v669, %v668
    %v717 = vpack.c.b16 %v671, %v670
    %v718 = vpack.c.b16 %v673, %v672
    %v719 = vpack.c.b16 %v675, %v674
    %v720 = vpack.c.b16 %v677, %v676
    %v721 = vpack.c.b16 %v679, %v678
    %v722 = vpack.c.b16 %v681, %v680
    %v723 = vpack.c.b16 %v683, %v682
    %v724 = vpack.c.b16 %v685, %v684
    %v725 = vpack.c.b16 %v687, %v686
    %v726 = vpack.c.b16 %v689, %v688
    %v727 = vpack.c.b16 %v691, %v690
    %vm764 = vcmask 523264
    %v766 = vsel %vm764, %v426, 0
    %v769 = vsel %vm764, %v431, 0
    %v772 = vsel %vm764, %v436, 0
    %v775 = vsel %vm764, %v441, 0
    %v778 = vsel %vm764, %v446, 0
    %v781 = vsel %vm764, %v451, 0
    %v784 = vsel %vm764, %v456, 0
    %v787 = vsel %vm764, %v461, 0
    %v790 = vsel %vm764, %v466, 0
    %v793 = vsel %vm764, %v471, 0
    %v796 = vsel %vm764, %v476, 0
    %v799 = vsel %vm764, %v481, 0
    %v802 = vsel %vm764, %v486, 0
    %v805 = vsel %vm764, %v491, 0
    %807 = vmatprep.subr.bf16.mxu0 0
    %808 = vmatpush1.bf16.msra.mxu0 %v699
    %809 = vmatprep.subr.bf16.mxu0 0
    %810 = vmatpush1.bf16.msra.mxu0 %v698
    %811 = vmatprep.subr.bf16.mxu0 0
    %812 = vmatpush1.bf16.msra.mxu0 %v697
    %813 = vmatprep.subr.bf16.mxu0 0
    %814 = vmatpush1.bf16.msra.mxu0 %v696
    %815 = vmatprep.subr.bf16.mxu0 0
    %816 = vmatpush1.bf16.msra.mxu0 %v695
    %817 = vmatprep.subr.bf16.mxu0 0
    %818 = vmatpush1.bf16.msra.mxu0 %v694
    %819 = vmatprep.subr.bf16.mxu0 0
    %820 = vmatpush1.bf16.msra.mxu0 %v693
    %821 = vmatprep.subr.bf16.mxu0 0
    %822 = vmatpush1.bf16.msra.mxu0 %v692
    %823 = vmatprep.subr.bf16.mxu0 0
    %824 = vmatpush2.bf16.msra.mxu0 %v707
    %825 = vmatprep.subr.bf16.mxu0 0
    %826 = vmatpush2.bf16.msra.mxu0 %v706
    %827 = vmatprep.subr.bf16.mxu0 0
    %828 = vmatpush2.bf16.msra.mxu0 %v705
    %829 = vmatprep.subr.bf16.mxu0 0
    %830 = vmatpush2.bf16.msra.mxu0 %v704
    %831 = vmatprep.subr.bf16.mxu0 0
    %832 = vmatpush2.bf16.msra.mxu0 %v703
    %833 = vmatprep.subr.bf16.mxu0 0
    %834 = vmatpush2.bf16.msra.mxu0 %v702
    %835 = vmatprep.subr.bf16.mxu0 0
    %836 = vmatpush2.bf16.msra.mxu0 %v701
    %837 = vmatprep.subr.bf16.mxu0 0
    %838 = vmatpush2.bf16.msra.mxu0 %v700
    %839 = vmatprep.mubr.bf16.mxu0 %v423
    %840 = vmatmul.mubr.bf16.gmra.mxu0 %v422
    %v841 = vpop.f32.mrf.mxu0
    %v842 = vadd.f32 %v204, %v841
    %v843 = vpop.f32.mrf.mxu0
    %v844 = vpop.f32.mrf.mxu0
    %v845 = vadd.f32 %v204, %v844
    %v846 = vpop.f32.mrf.mxu0
    %847 = vmatprep.mubr.bf16.mxu0 %v428
    %848 = vmatmul.mubr.bf16.gmra.mxu0 %v427
    %v849 = vpop.f32.mrf.mxu0
    %v850 = vadd.f32 %v204, %v849
    %v851 = vpop.f32.mrf.mxu0
    %v852 = vpop.f32.mrf.mxu0
    %v853 = vadd.f32 %v204, %v852
    %v854 = vpop.f32.mrf.mxu0
    %855 = vmatprep.mubr.bf16.mxu0 %v433
    %856 = vmatmul.mubr.bf16.gmra.mxu0 %v432
    %v857 = vpop.f32.mrf.mxu0
    %v858 = vadd.f32 %v204, %v857
    %v859 = vpop.f32.mrf.mxu0
    %v860 = vpop.f32.mrf.mxu0
    %v861 = vadd.f32 %v204, %v860
    %v862 = vpop.f32.mrf.mxu0
    %863 = vmatprep.mubr.bf16.mxu0 %v438
    %864 = vmatmul.mubr.bf16.gmra.mxu0 %v437
    %v865 = vpop.f32.mrf.mxu0
    %v866 = vadd.f32 %v204, %v865
    %v867 = vpop.f32.mrf.mxu0
    %v868 = vpop.f32.mrf.mxu0
    %v869 = vadd.f32 %v204, %v868
    %v870 = vpop.f32.mrf.mxu0
    %871 = vmatprep.mubr.bf16.mxu0 %v443
    %872 = vmatmul.mubr.bf16.gmra.mxu0 %v442
    %v873 = vpop.f32.mrf.mxu0
    %v874 = vadd.f32 %v204, %v873
    %v875 = vpop.f32.mrf.mxu0
    %v876 = vpop.f32.mrf.mxu0
    %v877 = vadd.f32 %v204, %v876
    %v878 = vpop.f32.mrf.mxu0
    %879 = vmatprep.mubr.bf16.mxu0 %v448
    %880 = vmatmul.mubr.bf16.gmra.mxu0 %v447
    %v881 = vpop.f32.mrf.mxu0
    %v882 = vadd.f32 %v204, %v881
    %v883 = vpop.f32.mrf.mxu0
    %v884 = vpop.f32.mrf.mxu0
    %v885 = vadd.f32 %v204, %v884
    %v886 = vpop.f32.mrf.mxu0
    %887 = vmatprep.mubr.bf16.mxu0 %v453
    %888 = vmatmul.mubr.bf16.gmra.mxu0 %v452
    %v889 = vpop.f32.mrf.mxu0
    %v890 = vadd.f32 %v204, %v889
    %v891 = vpop.f32.mrf.mxu0
    %v892 = vpop.f32.mrf.mxu0
    %v893 = vadd.f32 %v204, %v892
    %v894 = vpop.f32.mrf.mxu0
    %895 = vmatprep.mubr.bf16.mxu0 %v458
    %896 = vmatmul.mubr.bf16.gmra.mxu0 %v457
    %v897 = vpop.f32.mrf.mxu0
    %v898 = vadd.f32 %v204, %v897
    %v899 = vpop.f32.mrf.mxu0
    %v900 = vpop.f32.mrf.mxu0
    %v901 = vadd.f32 %v204, %v900
    %v902 = vpop.f32.mrf.mxu0
    %903 = vmatprep.mubr.bf16.mxu0 %v463
    %904 = vmatmul.mubr.bf16.gmra.mxu0 %v462
    %v905 = vpop.f32.mrf.mxu0
    %v906 = vadd.f32 %v204, %v905
    %v907 = vpop.f32.mrf.mxu0
    %v908 = vpop.f32.mrf.mxu0
    %v909 = vadd.f32 %v204, %v908
    %v910 = vpop.f32.mrf.mxu0
    %911 = vmatprep.mubr.bf16.mxu0 %v468
    %912 = vmatmul.mubr.bf16.gmra.mxu0 %v467
    %v913 = vpop.f32.mrf.mxu0
    %v914 = vadd.f32 %v204, %v913
    %v915 = vpop.f32.mrf.mxu0
    %v916 = vpop.f32.mrf.mxu0
    %v917 = vadd.f32 %v204, %v916
    %v918 = vpop.f32.mrf.mxu0
    %919 = vmatprep.mubr.bf16.mxu0 %v473
    %920 = vmatmul.mubr.bf16.gmra.mxu0 %v472
    %v921 = vpop.f32.mrf.mxu0
    %v922 = vadd.f32 %v204, %v921
    %v923 = vpop.f32.mrf.mxu0
    %v924 = vpop.f32.mrf.mxu0
    %v925 = vadd.f32 %v204, %v924
    %v926 = vpop.f32.mrf.mxu0
    %927 = vmatprep.mubr.bf16.mxu0 %v478
    %928 = vmatmul.mubr.bf16.gmra.mxu0 %v477
    %v929 = vpop.f32.mrf.mxu0
    %v930 = vadd.f32 %v204, %v929
    %v931 = vpop.f32.mrf.mxu0
    %v932 = vpop.f32.mrf.mxu0
    %v933 = vadd.f32 %v204, %v932
    %v934 = vpop.f32.mrf.mxu0
    %935 = vmatprep.mubr.bf16.mxu0 %v483
    %936 = vmatmul.mubr.bf16.gmra.mxu0 %v482
    %v937 = vpop.f32.mrf.mxu0
    %v938 = vadd.f32 %v204, %v937
    %v939 = vpop.f32.mrf.mxu0
    %v940 = vpop.f32.mrf.mxu0
    %v941 = vadd.f32 %v204, %v940
    %v942 = vpop.f32.mrf.mxu0
    %943 = vmatprep.mubr.bf16.mxu0 %v488
    %944 = vmatmul.mubr.bf16.gmra.mxu0 %v487
    %v945 = vpop.f32.mrf.mxu0
    %v946 = vadd.f32 %v204, %v945
    %v947 = vpop.f32.mrf.mxu0
    %v948 = vpop.f32.mrf.mxu0
    %v949 = vpop.f32.mrf.mxu0
    %950 = vdwg.mxu0
    %951 = vmatprep.subr.bf16.mxu0 0
    %952 = vmatpush1.bf16.msra.mxu0 %v715
    %953 = vmatprep.subr.bf16.mxu0 0
    %954 = vmatpush1.bf16.msra.mxu0 %v714
    %955 = vmatprep.subr.bf16.mxu0 0
    %956 = vmatpush1.bf16.msra.mxu0 %v713
    %957 = vmatprep.subr.bf16.mxu0 0
    %958 = vmatpush1.bf16.msra.mxu0 %v712
    %959 = vmatprep.subr.bf16.mxu0 0
    %960 = vmatpush1.bf16.msra.mxu0 %v711
    %961 = vmatprep.subr.bf16.mxu0 0
    %962 = vmatpush1.bf16.msra.mxu0 %v710
    %963 = vmatprep.subr.bf16.mxu0 0
    %964 = vmatpush1.bf16.msra.mxu0 %v709
    %965 = vmatprep.subr.bf16.mxu0 0
    %966 = vmatpush1.bf16.msra.mxu0 %v708
    %967 = vmatprep.subr.bf16.mxu0 0
    %968 = vmatpush2.bf16.msra.mxu0 %v723
    %969 = vmatprep.subr.bf16.mxu0 0
    %970 = vmatpush2.bf16.msra.mxu0 %v722
    %971 = vmatprep.subr.bf16.mxu0 0
    %972 = vmatpush2.bf16.msra.mxu0 %v721
    %973 = vmatprep.subr.bf16.mxu0 0
    %974 = vmatpush2.bf16.msra.mxu0 %v720
    %975 = vmatprep.subr.bf16.mxu0 0
    %976 = vmatpush2.bf16.msra.mxu0 %v719
    %977 = vmatprep.subr.bf16.mxu0 0
    %978 = vmatpush2.bf16.msra.mxu0 %v718
    %979 = vmatprep.subr.bf16.mxu0 0
    %980 = vmatpush2.bf16.msra.mxu0 %v717
    %981 = vmatprep.subr.bf16.mxu0 0
    %982 = vmatpush2.bf16.msra.mxu0 %v716
    %983 = vmatprep.mubr.bf16.mxu0 %v425
    %984 = vmatmul.mubr.bf16.gmra.mxu0 %v424
    %v985 = vpop.f32.mrf.mxu0
    %v986 = vadd.f32 %v842, %v985
    %v987 = vpop.f32.mrf.mxu0
    %v988 = vpop.f32.mrf.mxu0
    %v989 = vadd.f32 %v845, %v988
    %v990 = vpop.f32.mrf.mxu0
    %991 = vmatprep.mubr.bf16.mxu0 %v430
    %992 = vmatmul.mubr.bf16.gmra.mxu0 %v429
    %v993 = vpop.f32.mrf.mxu0
    %v994 = vadd.f32 %v850, %v993
    %v995 = vpop.f32.mrf.mxu0
    %v996 = vpop.f32.mrf.mxu0
    %v997 = vadd.f32 %v853, %v996
    %v998 = vpop.f32.mrf.mxu0
    %999 = vmatprep.mubr.bf16.mxu0 %v435
    %1000 = vmatmul.mubr.bf16.gmra.mxu0 %v434
    %v1001 = vpop.f32.mrf.mxu0
    %v1002 = vadd.f32 %v858, %v1001
    %v1003 = vpop.f32.mrf.mxu0
    %v1004 = vpop.f32.mrf.mxu0
    %v1005 = vadd.f32 %v861, %v1004
    %v1006 = vpop.f32.mrf.mxu0
    %1007 = vmatprep.mubr.bf16.mxu0 %v440
    %1008 = vmatmul.mubr.bf16.gmra.mxu0 %v439
    %v1009 = vpop.f32.mrf.mxu0
    %v1010 = vadd.f32 %v866, %v1009
    %v1011 = vpop.f32.mrf.mxu0
    %v1012 = vpop.f32.mrf.mxu0
    %v1013 = vadd.f32 %v869, %v1012
    %v1014 = vpop.f32.mrf.mxu0
    %1015 = vmatprep.mubr.bf16.mxu0 %v445
    %1016 = vmatmul.mubr.bf16.gmra.mxu0 %v444
    %v1017 = vpop.f32.mrf.mxu0
    %v1018 = vadd.f32 %v874, %v1017
    %v1019 = vpop.f32.mrf.mxu0
    %v1020 = vpop.f32.mrf.mxu0
    %v1021 = vadd.f32 %v877, %v1020
    %v1022 = vpop.f32.mrf.mxu0
    %1023 = vmatprep.mubr.bf16.mxu0 %v450
    %1024 = vmatmul.mubr.bf16.gmra.mxu0 %v449
    %v1025 = vpop.f32.mrf.mxu0
    %v1026 = vadd.f32 %v882, %v1025
    %v1027 = vpop.f32.mrf.mxu0
    %v1028 = vpop.f32.mrf.mxu0
    %v1029 = vadd.f32 %v885, %v1028
    %v1030 = vpop.f32.mrf.mxu0
    %1031 = vmatprep.mubr.bf16.mxu0 %v455
    %1032 = vmatmul.mubr.bf16.gmra.mxu0 %v454
    %v1033 = vpop.f32.mrf.mxu0
    %v1034 = vadd.f32 %v890, %v1033
    %v1035 = vpop.f32.mrf.mxu0
    %v1036 = vpop.f32.mrf.mxu0
    %v1037 = vadd.f32 %v893, %v1036
    %v1038 = vpop.f32.mrf.mxu0
    %1039 = vmatprep.mubr.bf16.mxu0 %v460
    %1040 = vmatmul.mubr.bf16.gmra.mxu0 %v459
    %v1041 = vpop.f32.mrf.mxu0
    %v1042 = vadd.f32 %v898, %v1041
    %v1043 = vpop.f32.mrf.mxu0
    %v1044 = vpop.f32.mrf.mxu0
    %v1045 = vadd.f32 %v901, %v1044
    %v1046 = vpop.f32.mrf.mxu0
    %1047 = vmatprep.mubr.bf16.mxu0 %v465
    %1048 = vmatmul.mubr.bf16.gmra.mxu0 %v464
    %v1049 = vpop.f32.mrf.mxu0
    %v1050 = vadd.f32 %v906, %v1049
    %v1051 = vpop.f32.mrf.mxu0
    %v1052 = vpop.f32.mrf.mxu0
    %v1053 = vadd.f32 %v909, %v1052
    %v1054 = vpop.f32.mrf.mxu0
    %1055 = vmatprep.mubr.bf16.mxu0 %v470
    %1056 = vmatmul.mubr.bf16.gmra.mxu0 %v469
    %v1057 = vpop.f32.mrf.mxu0
    %v1058 = vadd.f32 %v914, %v1057
    %v1059 = vpop.f32.mrf.mxu0
    %v1060 = vpop.f32.mrf.mxu0
    %v1061 = vadd.f32 %v917, %v1060
    %v1062 = vpop.f32.mrf.mxu0
    %1063 = vmatprep.mubr.bf16.mxu0 %v475
    %1064 = vmatmul.mubr.bf16.gmra.mxu0 %v474
    %v1065 = vpop.f32.mrf.mxu0
    %v1066 = vadd.f32 %v922, %v1065
    %v1067 = vpop.f32.mrf.mxu0
    %v1068 = vpop.f32.mrf.mxu0
    %v1069 = vadd.f32 %v925, %v1068
    %v1070 = vpop.f32.mrf.mxu0
    %1071 = vmatprep.mubr.bf16.mxu0 %v480
    %1072 = vmatmul.mubr.bf16.gmra.mxu0 %v479
    %v1073 = vpop.f32.mrf.mxu0
    %v1074 = vadd.f32 %v930, %v1073
    %v1075 = vpop.f32.mrf.mxu0
    %v1076 = vpop.f32.mrf.mxu0
    %v1077 = vadd.f32 %v933, %v1076
    %v1078 = vpop.f32.mrf.mxu0
    %1079 = vmatprep.mubr.bf16.mxu0 %v485
    %1080 = vmatmul.mubr.bf16.gmra.mxu0 %v484
    %v1081 = vpop.f32.mrf.mxu0
    %v1082 = vadd.f32 %v938, %v1081
    %v1083 = vpop.f32.mrf.mxu0
    %v1084 = vpop.f32.mrf.mxu0
    %v1085 = vadd.f32 %v941, %v1084
    %v1086 = vpop.f32.mrf.mxu0
    %1087 = vmatprep.mubr.bf16.mxu0 %v490
    %1088 = vmatmul.mubr.bf16.gmra.mxu0 %v489
    %v1089 = vpop.f32.mrf.mxu0
    %v1090 = vadd.f32 %v946, %v1089
    %v1091 = vpop.f32.mrf.mxu0
    %v1092 = vpop.f32.mrf.mxu0
    %v1093 = vpop.f32.mrf.mxu0
    %1094 = vdwg.mxu0
    %1095 = vmatprep.subr.bf16.mxu0 0
    %1096 = vmatpush1.bf16.msra.mxu0 0
    %1097 = vmatprep.subr.bf16.mxu0 0
    %1098 = vmatpush1.bf16.msra.mxu0 0
    %1099 = vmatprep.subr.bf16.mxu0 0
    %1100 = vmatpush1.bf16.msra.mxu0 0
    %1101 = vmatprep.subr.bf16.mxu0 0
    %1102 = vmatpush1.bf16.msra.mxu0 0
    %1103 = vmatprep.subr.bf16.mxu0 0
    %1104 = vmatpush1.bf16.msra.mxu0 %v727
    %1105 = vmatprep.subr.bf16.mxu0 0
    %1106 = vmatpush1.bf16.msra.mxu0 %v726
    %1107 = vmatprep.subr.bf16.mxu0 0
    %1108 = vmatpush1.bf16.msra.mxu0 %v725
    %1109 = vmatprep.subr.bf16.mxu0 0
    %1110 = vmatpush1.bf16.msra.mxu0 %v724
    %1111 = vmatprep.subr.bf16.mxu0 0
    %1112 = vmatpush2.bf16.msra.mxu0 0
    %1113 = vmatprep.subr.bf16.mxu0 0
    %1114 = vmatpush2.bf16.msra.mxu0 0
    %1115 = vmatprep.subr.bf16.mxu0 0
    %1116 = vmatpush2.bf16.msra.mxu0 0
    %1117 = vmatprep.subr.bf16.mxu0 0
    %1118 = vmatpush2.bf16.msra.mxu0 0
    %1119 = vmatprep.subr.bf16.mxu0 0
    %1120 = vmatpush2.bf16.msra.mxu0 0
    %1121 = vmatprep.subr.bf16.mxu0 0
    %1122 = vmatpush2.bf16.msra.mxu0 0
    %1123 = vmatprep.subr.bf16.mxu0 0
    %1124 = vmatpush2.bf16.msra.mxu0 0
    %1125 = vmatprep.subr.bf16.mxu0 0
    %1126 = vmatpush2.bf16.msra.mxu0 0
    %1127 = vmatprep.mubr.bf16.mxu0 0
    %1128 = vmatmul.mubr.bf16.gmra.mxu0 %v766
    %v1129 = vpop.f32.mrf.mxu0
    %v1130 = vadd.f32 %v986, %v1129
    %v1131 = vpop.f32.mrf.mxu0
    %v1132 = vpop.f32.mrf.mxu0
    %v1133 = vadd.f32 %v989, %v1132
    %v1134 = vpop.f32.mrf.mxu0
    %1135 = vmatprep.mubr.bf16.mxu0 0
    %1136 = vmatmul.mubr.bf16.gmra.mxu0 %v769
    %v1137 = vpop.f32.mrf.mxu0
    %v1138 = vadd.f32 %v994, %v1137
    %v1139 = vpop.f32.mrf.mxu0
    %v1140 = vpop.f32.mrf.mxu0
    %v1141 = vadd.f32 %v997, %v1140
    %v1142 = vpop.f32.mrf.mxu0
    %1143 = vmatprep.mubr.bf16.mxu0 0
    %1144 = vmatmul.mubr.bf16.gmra.mxu0 %v772
    %v1145 = vpop.f32.mrf.mxu0
    %v1146 = vadd.f32 %v1002, %v1145
    %v1147 = vpop.f32.mrf.mxu0
    %v1148 = vpop.f32.mrf.mxu0
    %v1149 = vadd.f32 %v1005, %v1148
    %v1150 = vpop.f32.mrf.mxu0
    %1151 = vmatprep.mubr.bf16.mxu0 0
    %1152 = vmatmul.mubr.bf16.gmra.mxu0 %v775
    %v1153 = vpop.f32.mrf.mxu0
    %v1154 = vadd.f32 %v1010, %v1153
    %v1155 = vpop.f32.mrf.mxu0
    %v1156 = vpop.f32.mrf.mxu0
    %v1157 = vadd.f32 %v1013, %v1156
    %v1158 = vpop.f32.mrf.mxu0
    %1159 = vmatprep.mubr.bf16.mxu0 0
    %1160 = vmatmul.mubr.bf16.gmra.mxu0 %v778
    %v1161 = vpop.f32.mrf.mxu0
    %v1162 = vadd.f32 %v1018, %v1161
    %v1163 = vpop.f32.mrf.mxu0
    %v1164 = vpop.f32.mrf.mxu0
    %v1165 = vadd.f32 %v1021, %v1164
    %v1166 = vpop.f32.mrf.mxu0
    %1167 = vmatprep.mubr.bf16.mxu0 0
    %1168 = vmatmul.mubr.bf16.gmra.mxu0 %v781
    %v1169 = vpop.f32.mrf.mxu0
    %v1170 = vadd.f32 %v1026, %v1169
    %v1171 = vpop.f32.mrf.mxu0
    %v1172 = vpop.f32.mrf.mxu0
    %v1173 = vadd.f32 %v1029, %v1172
    %v1174 = vpop.f32.mrf.mxu0
    %1175 = vmatprep.mubr.bf16.mxu0 0
    %1176 = vmatmul.mubr.bf16.gmra.mxu0 %v784
    %v1177 = vpop.f32.mrf.mxu0
    %v1178 = vadd.f32 %v1034, %v1177
    %v1179 = vpop.f32.mrf.mxu0
    %v1180 = vpop.f32.mrf.mxu0
    %v1181 = vadd.f32 %v1037, %v1180
    %v1182 = vpop.f32.mrf.mxu0
    %1183 = vmatprep.mubr.bf16.mxu0 0
    %1184 = vmatmul.mubr.bf16.gmra.mxu0 %v787
    %v1185 = vpop.f32.mrf.mxu0
    %v1186 = vadd.f32 %v1042, %v1185
    %v1187 = vpop.f32.mrf.mxu0
    %v1188 = vpop.f32.mrf.mxu0
    %v1189 = vadd.f32 %v1045, %v1188
    %v1190 = vpop.f32.mrf.mxu0
    %1191 = vmatprep.mubr.bf16.mxu0 0
    %1192 = vmatmul.mubr.bf16.gmra.mxu0 %v790
    %v1193 = vpop.f32.mrf.mxu0
    %v1194 = vadd.f32 %v1050, %v1193
    %v1195 = vpop.f32.mrf.mxu0
    %v1196 = vpop.f32.mrf.mxu0
    %v1197 = vadd.f32 %v1053, %v1196
    %v1198 = vpop.f32.mrf.mxu0
    %1199 = vmatprep.mubr.bf16.mxu0 0
    %1200 = vmatmul.mubr.bf16.gmra.mxu0 %v793
    %v1201 = vpop.f32.mrf.mxu0
    %v1202 = vadd.f32 %v1058, %v1201
    %v1203 = vpop.f32.mrf.mxu0
    %v1204 = vpop.f32.mrf.mxu0
    %v1205 = vadd.f32 %v1061, %v1204
    %v1206 = vpop.f32.mrf.mxu0
    %1207 = vmatprep.mubr.bf16.mxu0 0
    %1208 = vmatmul.mubr.bf16.gmra.mxu0 %v796
    %v1209 = vpop.f32.mrf.mxu0
    %v1210 = vadd.f32 %v1066, %v1209
    %v1211 = vpop.f32.mrf.mxu0
    %v1212 = vpop.f32.mrf.mxu0
    %v1213 = vadd.f32 %v1069, %v1212
    %v1214 = vpop.f32.mrf.mxu0
    %1215 = vmatprep.mubr.bf16.mxu0 0
    %1216 = vmatmul.mubr.bf16.gmra.mxu0 %v799
    %v1217 = vpop.f32.mrf.mxu0
    %v1218 = vadd.f32 %v1074, %v1217
    %v1219 = vpop.f32.mrf.mxu0
    %v1220 = vpop.f32.mrf.mxu0
    %v1221 = vadd.f32 %v1077, %v1220
    %v1222 = vpop.f32.mrf.mxu0
    %1223 = vmatprep.mubr.bf16.mxu0 0
    %1224 = vmatmul.mubr.bf16.gmra.mxu0 %v802
    %v1225 = vpop.f32.mrf.mxu0
    %v1226 = vadd.f32 %v1082, %v1225
    %v1227 = vpop.f32.mrf.mxu0
    %v1228 = vpop.f32.mrf.mxu0
    %v1229 = vadd.f32 %v1085, %v1228
    %v1230 = vpop.f32.mrf.mxu0
    %1231 = vmatprep.mubr.bf16.mxu0 0
    %1232 = vmatmul.mubr.bf16.gmra.mxu0 %v805
    %v1233 = vpop.f32.mrf.mxu0
    %v1234 = vadd.f32 %v1090, %v1233
    %v1235 = vpop.f32.mrf.mxu0
    %v1236 = vpop.f32.mrf.mxu0
    %v1237 = vpop.f32.mrf.mxu0
    %1238 = vdwg.mxu0
    %v1239 = vmax.f32 %v1130, 0.0
    %v1240 = vmax.f32 %v1133, 0.0
    %v1241 = vmax.f32 %v1138, 0.0
    %v1242 = vmax.f32 %v1141, 0.0
    %v1243 = vmax.f32 %v1146, 0.0
    %v1244 = vmax.f32 %v1149, 0.0
    %v1245 = vmax.f32 %v1154, 0.0
    %v1246 = vmax.f32 %v1157, 0.0
    %v1247 = vmax.f32 %v1162, 0.0
    %v1248 = vmax.f32 %v1165, 0.0
    %v1249 = vmax.f32 %v1170, 0.0
    %v1250 = vmax.f32 %v1173, 0.0
    %v1251 = vmax.f32 %v1178, 0.0
    %v1252 = vmax.f32 %v1181, 0.0
    %v1253 = vmax.f32 %v1186, 0.0
    %v1254 = vmax.f32 %v1189, 0.0
    %v1255 = vmax.f32 %v1194, 0.0
    %v1256 = vmax.f32 %v1197, 0.0
    %v1257 = vmax.f32 %v1202, 0.0
    %v1258 = vmax.f32 %v1205, 0.0
    %v1259 = vmax.f32 %v1210, 0.0
    %v1260 = vmax.f32 %v1213, 0.0
    %v1261 = vmax.f32 %v1218, 0.0
    %v1262 = vmax.f32 %v1221, 0.0
    %v1263 = vmax.f32 %v1226, 0.0
    %v1264 = vmax.f32 %v1229, 0.0
    %v1265 = vmax.f32 %v1234, 0.0
    %v1266 = vpack.c.bf16 %v1240, %v1239
    %v1267 = vpack.c.bf16 %v1242, %v1241
    %v1268 = vpack.c.bf16 %v1244, %v1243
    %v1269 = vpack.c.bf16 %v1246, %v1245
    %v1270 = vpack.c.bf16 %v1248, %v1247
    %v1271 = vpack.c.bf16 %v1250, %v1249
    %v1272 = vpack.c.bf16 %v1252, %v1251
    %v1273 = vpack.c.bf16 %v1254, %v1253
    %v1274 = vpack.c.bf16 %v1256, %v1255
    %v1275 = vpack.c.bf16 %v1258, %v1257
    %v1276 = vpack.c.bf16 %v1260, %v1259
    %v1277 = vpack.c.bf16 %v1262, %v1261
    %v1278 = vpack.c.bf16 %v1264, %v1263
    %v1279 = vpack.c.bf16 %v1265, %v1265
    %v1280 = vld [vmem:[%s3] sm:$0xf]
    %v1281 = vld [vmem:[%s3 + $0x4] sm:$0xf]
    %v1282 = vld [vmem:[%s3 + $0x8] sm:$0xf]
    %v1283 = vld [vmem:[%s3 + $0xc] sm:$0xf]
    %v1284 = vld [vmem:[%s3 + $0x10] sm:$0xf]
    %v1285 = vld [vmem:[%s3 + $0x14] sm:$0xf]
    %v1286 = vld [vmem:[%s3 + $0x18] sm:$0xf]
    %v1287 = vld [vmem:[%s3 + $0x1c] sm:$0xf]
    %v1288 = vld [vmem:[%s3 + $0x20] sm:$0xf]
    %v1289 = vld [vmem:[%s4] sm:$0x1]
    %v1291 = vlaneseq
    %v1292 = vshrl.u32 %v1291, 7
    %v1293 = vsub.s32 0, %v1292
    %v1294 = vrot.slane %v1289, %v1293
    %v1305 = vunpack.c.l.b16 %v1280
    %v1306 = vunpack.c.l.b16 %v1281
    %v1307 = vunpack.c.l.b16 %v1282
    %v1308 = vunpack.c.l.b16 %v1283
    %v1309 = vunpack.c.l.b16 %v1284
    %v1310 = vunpack.c.l.b16 %v1285
    %v1311 = vunpack.c.l.b16 %v1286
    %v1312 = vunpack.c.l.b16 %v1287
    %v1313 = vunpack.c.l.b16 %v1288
    %v1314 = vpack.c.b16 %v1306, %v1305
    %v1315 = vpack.c.b16 %v1308, %v1307
    %v1316 = vpack.c.b16 %v1310, %v1309
    %v1317 = vpack.c.b16 %v1312, %v1311
    %v1318 = vpack.c.b16 %v1313, %v1313
    %vm1323 = vcmask 588800
    %v1325 = vsel %vm1323, %v1266, 0
    %v1328 = vsel %vm1323, %v1267, 0
    %v1331 = vsel %vm1323, %v1268, 0
    %v1334 = vsel %vm1323, %v1269, 0
    %v1337 = vsel %vm1323, %v1270, 0
    %v1340 = vsel %vm1323, %v1271, 0
    %v1343 = vsel %vm1323, %v1272, 0
    %v1346 = vsel %vm1323, %v1273, 0
    %v1349 = vsel %vm1323, %v1274, 0
    %v1352 = vsel %vm1323, %v1275, 0
    %v1355 = vsel %vm1323, %v1276, 0
    %v1358 = vsel %vm1323, %v1277, 0
    %v1361 = vsel %vm1323, %v1278, 0
    %v1364 = vsel %vm1323, %v1279, 0
    %vm1366 = vcmask 1043456
    %v1368 = vsel %vm1366, %v1318, 0
    %1370 = vmatprep.subr.bf16.mxu0 0
    %1371 = vmatpush1.bf16.msra.mxu0 0
    %1372 = vmatprep.subr.bf16.mxu0 0
    %1373 = vmatpush1.bf16.msra.mxu0 0
    %1374 = vmatprep.subr.bf16.mxu0 0
    %1375 = vmatpush1.bf16.msra.mxu0 0
    %1376 = vmatprep.subr.bf16.mxu0 0
    %1377 = vmatpush1.bf16.msra.mxu0 %v1368
    %1378 = vmatprep.subr.bf16.mxu0 0
    %1379 = vmatpush1.bf16.msra.mxu0 %v1317
    %1380 = vmatprep.subr.bf16.mxu0 0
    %1381 = vmatpush1.bf16.msra.mxu0 %v1316
    %1382 = vmatprep.subr.bf16.mxu0 0
    %1383 = vmatpush1.bf16.msra.mxu0 %v1315
    %1384 = vmatprep.subr.bf16.mxu0 0
    %1385 = vmatpush1.bf16.msra.mxu0 %v1314
    %1386 = vmatprep.subr.bf16.mxu0 0
    %1387 = vmatpush2.bf16.msra.mxu0 0
    %1388 = vmatprep.subr.bf16.mxu0 0
    %1389 = vmatpush2.bf16.msra.mxu0 0
    %1390 = vmatprep.subr.bf16.mxu0 0
    %1391 = vmatpush2.bf16.msra.mxu0 0
    %1392 = vmatprep.subr.bf16.mxu0 0
    %1393 = vmatpush2.bf16.msra.mxu0 0
    %1394 = vmatprep.subr.bf16.mxu0 0
    %1395 = vmatpush2.bf16.msra.mxu0 0
    %1396 = vmatprep.subr.bf16.mxu0 0
    %1397 = vmatpush2.bf16.msra.mxu0 0
    %1398 = vmatprep.subr.bf16.mxu0 0
    %1399 = vmatpush2.bf16.msra.mxu0 0
    %1400 = vmatprep.subr.bf16.mxu0 0
    %1401 = vmatpush2.bf16.msra.mxu0 0
    %1402 = vmatprep.mubr.bf16.mxu0 0
    %1403 = vmatmul.mubr.bf16.gmra.mxu0 %v1325
    %v1404 = vpop.f32.mrf.mxu0
    %v1405 = vadd.f32 %v1294, %v1404
    %v1406 = vpop.f32.mrf.mxu0
    %v1407 = vpop.f32.mrf.mxu0
    %v1408 = vadd.f32 %v1294, %v1407
    %v1409 = vpop.f32.mrf.mxu0
    %1410 = vmatprep.mubr.bf16.mxu0 0
    %1411 = vmatmul.mubr.bf16.gmra.mxu0 %v1328
    %v1412 = vpop.f32.mrf.mxu0
    %v1413 = vadd.f32 %v1294, %v1412
    %v1414 = vpop.f32.mrf.mxu0
    %v1415 = vpop.f32.mrf.mxu0
    %v1416 = vadd.f32 %v1294, %v1415
    %v1417 = vpop.f32.mrf.mxu0
    %1418 = vmatprep.mubr.bf16.mxu0 0
    %1419 = vmatmul.mubr.bf16.gmra.mxu0 %v1331
    %v1420 = vpop.f32.mrf.mxu0
    %v1421 = vadd.f32 %v1294, %v1420
    %v1422 = vpop.f32.mrf.mxu0
    %v1423 = vpop.f32.mrf.mxu0
    %v1424 = vadd.f32 %v1294, %v1423
    %v1425 = vpop.f32.mrf.mxu0
    %1426 = vmatprep.mubr.bf16.mxu0 0
    %1427 = vmatmul.mubr.bf16.gmra.mxu0 %v1334
    %v1428 = vpop.f32.mrf.mxu0
    %v1429 = vadd.f32 %v1294, %v1428
    %v1430 = vpop.f32.mrf.mxu0
    %v1431 = vpop.f32.mrf.mxu0
    %v1432 = vadd.f32 %v1294, %v1431
    %v1433 = vpop.f32.mrf.mxu0
    %1434 = vmatprep.mubr.bf16.mxu0 0
    %1435 = vmatmul.mubr.bf16.gmra.mxu0 %v1337
    %v1436 = vpop.f32.mrf.mxu0
    %v1437 = vadd.f32 %v1294, %v1436
    %v1438 = vpop.f32.mrf.mxu0
    %v1439 = vpop.f32.mrf.mxu0
    %v1440 = vadd.f32 %v1294, %v1439
    %v1441 = vpop.f32.mrf.mxu0
    %1442 = vmatprep.mubr.bf16.mxu0 0
    %1443 = vmatmul.mubr.bf16.gmra.mxu0 %v1340
    %v1444 = vpop.f32.mrf.mxu0
    %v1445 = vadd.f32 %v1294, %v1444
    %v1446 = vpop.f32.mrf.mxu0
    %v1447 = vpop.f32.mrf.mxu0
    %v1448 = vadd.f32 %v1294, %v1447
    %v1449 = vpop.f32.mrf.mxu0
    %1450 = vmatprep.mubr.bf16.mxu0 0
    %1451 = vmatmul.mubr.bf16.gmra.mxu0 %v1343
    %v1452 = vpop.f32.mrf.mxu0
    %v1453 = vadd.f32 %v1294, %v1452
    %v1454 = vpop.f32.mrf.mxu0
    %v1455 = vpop.f32.mrf.mxu0
    %v1456 = vadd.f32 %v1294, %v1455
    %v1457 = vpop.f32.mrf.mxu0
    %1458 = vmatprep.mubr.bf16.mxu0 0
    %1459 = vmatmul.mubr.bf16.gmra.mxu0 %v1346
    %v1460 = vpop.f32.mrf.mxu0
    %v1461 = vadd.f32 %v1294, %v1460
    %v1462 = vpop.f32.mrf.mxu0
    %v1463 = vpop.f32.mrf.mxu0
    %v1464 = vadd.f32 %v1294, %v1463
    %v1465 = vpop.f32.mrf.mxu0
    %1466 = vmatprep.mubr.bf16.mxu0 0
    %1467 = vmatmul.mubr.bf16.gmra.mxu0 %v1349
    %v1468 = vpop.f32.mrf.mxu0
    %v1469 = vadd.f32 %v1294, %v1468
    %v1470 = vpop.f32.mrf.mxu0
    %v1471 = vpop.f32.mrf.mxu0
    %v1472 = vadd.f32 %v1294, %v1471
    %v1473 = vpop.f32.mrf.mxu0
    %1474 = vmatprep.mubr.bf16.mxu0 0
    %1475 = vmatmul.mubr.bf16.gmra.mxu0 %v1352
    %v1476 = vpop.f32.mrf.mxu0
    %v1477 = vadd.f32 %v1294, %v1476
    %v1478 = vpop.f32.mrf.mxu0
    %v1479 = vpop.f32.mrf.mxu0
    %v1480 = vadd.f32 %v1294, %v1479
    %v1481 = vpop.f32.mrf.mxu0
    %1482 = vmatprep.mubr.bf16.mxu0 0
    %1483 = vmatmul.mubr.bf16.gmra.mxu0 %v1355
    %v1484 = vpop.f32.mrf.mxu0
    %v1485 = vadd.f32 %v1294, %v1484
    %v1486 = vpop.f32.mrf.mxu0
    %v1487 = vpop.f32.mrf.mxu0
    %v1488 = vadd.f32 %v1294, %v1487
    %v1489 = vpop.f32.mrf.mxu0
    %1490 = vmatprep.mubr.bf16.mxu0 0
    %1491 = vmatmul.mubr.bf16.gmra.mxu0 %v1358
    %v1492 = vpop.f32.mrf.mxu0
    %v1493 = vadd.f32 %v1294, %v1492
    %v1494 = vpop.f32.mrf.mxu0
    %v1495 = vpop.f32.mrf.mxu0
    %v1496 = vadd.f32 %v1294, %v1495
    %v1497 = vpop.f32.mrf.mxu0
    %1498 = vmatprep.mubr.bf16.mxu0 0
    %1499 = vmatmul.mubr.bf16.gmra.mxu0 %v1361
    %v1500 = vpop.f32.mrf.mxu0
    %v1501 = vadd.f32 %v1294, %v1500
    %v1502 = vpop.f32.mrf.mxu0
    %v1503 = vpop.f32.mrf.mxu0
    %v1504 = vadd.f32 %v1294, %v1503
    %v1505 = vpop.f32.mrf.mxu0
    %1506 = vmatprep.mubr.bf16.mxu0 0
    %1507 = vmatmul.mubr.bf16.gmra.mxu0 %v1364
    %v1508 = vpop.f32.mrf.mxu0
    %v1509 = vadd.f32 %v1294, %v1508
    %v1510 = vpop.f32.mrf.mxu0
    %v1511 = vpop.f32.mrf.mxu0
    %v1512 = vpop.f32.mrf.mxu0
    %1513 = vdwg.mxu0
    %v1514 = vmax.f32 %v1405, 0.0
    %v1515 = vmax.f32 %v1408, 0.0
    %v1516 = vmax.f32 %v1413, 0.0
    %v1517 = vmax.f32 %v1416, 0.0
    %v1518 = vmax.f32 %v1421, 0.0
    %v1519 = vmax.f32 %v1424, 0.0
    %v1520 = vmax.f32 %v1429, 0.0
    %v1521 = vmax.f32 %v1432, 0.0
    %v1522 = vmax.f32 %v1437, 0.0
    %v1523 = vmax.f32 %v1440, 0.0
    %v1524 = vmax.f32 %v1445, 0.0
    %v1525 = vmax.f32 %v1448, 0.0
    %v1526 = vmax.f32 %v1453, 0.0
    %v1527 = vmax.f32 %v1456, 0.0
    %v1528 = vmax.f32 %v1461, 0.0
    %v1529 = vmax.f32 %v1464, 0.0
    %v1530 = vmax.f32 %v1469, 0.0
    %v1531 = vmax.f32 %v1472, 0.0
    %v1532 = vmax.f32 %v1477, 0.0
    %v1533 = vmax.f32 %v1480, 0.0
    %v1534 = vmax.f32 %v1485, 0.0
    %v1535 = vmax.f32 %v1488, 0.0
    %v1536 = vmax.f32 %v1493, 0.0
    %v1537 = vmax.f32 %v1496, 0.0
    %v1538 = vmax.f32 %v1501, 0.0
    %v1539 = vmax.f32 %v1504, 0.0
    %v1540 = vmax.f32 %v1509, 0.0
    %vm1541 = vcmask 130048
    %1542 = vst.msk [vmem:[#allocation2] sm:$0xff] %vm1541, %v1514
    %1543 = vst.msk [vmem:[#allocation2 + $0x10] sm:$0xff] %vm1541, %v1515
    %1544 = vst.msk [vmem:[#allocation2 + $0x20] sm:$0xff] %vm1541, %v1516
    %1548 = vrot.lane.b32.xlu0 %v1517, 16
    %v1549 = vpop.permute.xlu0 %1548
    %1550 = vrot.lane.b32.xlu0 %v1518, 16
    %v1551 = vpop.permute.xlu0 %1550
    %1552 = vrot.lane.b32.xlu0 %v1519, 16
    %v1553 = vpop.permute.xlu0 %1552
    %vm1557 = vcmask 261248
    %1558 = vst.msk [vmem:[#allocation2] sm:$0xff] %vm1557, %v1549
    %1559 = vst.msk [vmem:[#allocation2 + $0x10] sm:$0xff] %vm1557, %v1551
    %1560 = vst.msk [vmem:[#allocation2 + $0x20] sm:$0xff] %vm1557, %v1553
    %1564 = vrot.lane.b32.xlu0 %v1520, 32
    %v1565 = vpop.permute.xlu0 %1564
    %1566 = vrot.lane.b32.xlu0 %v1521, 32
    %v1567 = vpop.permute.xlu0 %1566
    %1568 = vrot.lane.b32.xlu0 %v1522, 32
    %v1569 = vpop.permute.xlu0 %1568
    %vm1573 = vcmask 392448
    %1574 = vst.msk [vmem:[#allocation2] sm:$0xff] %vm1573, %v1565
    %1575 = vst.msk [vmem:[#allocation2 + $0x10] sm:$0xff] %vm1573, %v1567
    %1576 = vst.msk [vmem:[#allocation2 + $0x20] sm:$0xff] %vm1573, %v1569
    %1580 = vrot.lane.b32.xlu0 %v1523, 48
    %v1581 = vpop.permute.xlu0 %1580
    %1582 = vrot.lane.b32.xlu0 %v1524, 48
    %v1583 = vpop.permute.xlu0 %1582
    %1584 = vrot.lane.b32.xlu0 %v1525, 48
    %v1585 = vpop.permute.xlu0 %1584
    %vm1589 = vcmask 523648
    %1590 = vst.msk [vmem:[#allocation2] sm:$0xff] %vm1589, %v1581
    %1591 = vst.msk [vmem:[#allocation2 + $0x10] sm:$0xff] %vm1589, %v1583
    %1592 = vst.msk [vmem:[#allocation2 + $0x20] sm:$0xff] %vm1589, %v1585
    %1596 = vrot.lane.b32.xlu0 %v1526, 64
    %v1597 = vpop.permute.xlu0 %1596
    %1598 = vrot.lane.b32.xlu0 %v1527, 64
    %v1599 = vpop.permute.xlu0 %1598
    %1600 = vrot.lane.b32.xlu0 %v1528, 64
    %v1601 = vpop.permute.xlu0 %1600
    %vm1605 = vcmask 654848
    %1606 = vst.msk [vmem:[#allocation2] sm:$0xff] %vm1605, %v1597
    %1607 = vst.msk [vmem:[#allocation2 + $0x10] sm:$0xff] %vm1605, %v1599
    %1608 = vst.msk [vmem:[#allocation2 + $0x20] sm:$0xff] %vm1605, %v1601
    %1612 = vrot.lane.b32.xlu0 %v1529, 80
    %v1613 = vpop.permute.xlu0 %1612
    %1614 = vrot.lane.b32.xlu0 %v1530, 80
    %v1615 = vpop.permute.xlu0 %1614
    %1616 = vrot.lane.b32.xlu0 %v1531, 80
    %v1617 = vpop.permute.xlu0 %1616
    %vm1621 = vcmask 786048
    %1622 = vst.msk [vmem:[#allocation2] sm:$0xff] %vm1621, %v1613
    %1623 = vst.msk [vmem:[#allocation2 + $0x10] sm:$0xff] %vm1621, %v1615
    %1624 = vst.msk [vmem:[#allocation2 + $0x20] sm:$0xff] %vm1621, %v1617
    %1628 = vrot.lane.b32.xlu0 %v1532, 96
    %v1629 = vpop.permute.xlu0 %1628
    %1630 = vrot.lane.b32.xlu0 %v1533, 96
    %v1631 = vpop.permute.xlu0 %1630
    %1632 = vrot.lane.b32.xlu0 %v1534, 96
    %v1633 = vpop.permute.xlu0 %1632
    %vm1637 = vcmask 917248
    %1638 = vst.msk [vmem:[#allocation2] sm:$0xff] %vm1637, %v1629
    %1639 = vst.msk [vmem:[#allocation2 + $0x10] sm:$0xff] %vm1637, %v1631
    %1640 = vst.msk [vmem:[#allocation2 + $0x20] sm:$0xff] %vm1637, %v1633
    %1644 = vrot.lane.b32.xlu0 %v1535, 112
    %v1645 = vpop.permute.xlu0 %1644
    %1646 = vrot.lane.b32.xlu0 %v1536, 112
    %v1647 = vpop.permute.xlu0 %1646
    %1648 = vrot.lane.b32.xlu0 %v1537, 112
    %v1649 = vpop.permute.xlu0 %1648
    %vm1653 = vcmask 1048448
    %1654 = vst.msk [vmem:[#allocation2] sm:$0xff] %vm1653, %v1645
    %1655 = vst.msk [vmem:[#allocation2 + $0x10] sm:$0xff] %vm1653, %v1647
    %1656 = vst.msk [vmem:[#allocation2 + $0x20] sm:$0xff] %vm1653, %v1649
    %1657 = vst.msk [vmem:[#allocation2 + $0x8] sm:$0xff] %vm1541, %v1538
    %1658 = vst.msk [vmem:[#allocation2 + $0x18] sm:$0xff] %vm1541, %v1539
    %1659 = vst.msk [vmem:[#allocation2 + $0x28] sm:$0xff] %vm1541, %v1540
    %v1660 = vld [vmem:[#allocation2] sm:$0xff]
    %v1661 = vld [vmem:[#allocation2 + $0x8] sm:$0xff]
    %v1662 = vld [vmem:[#allocation2 + $0x10] sm:$0xff]
    %v1663 = vld [vmem:[#allocation2 + $0x18] sm:$0xff]
    %v1664 = vld [vmem:[#allocation2 + $0x20] sm:$0xff]
    %v1665 = vld [vmem:[#allocation2 + $0x28] sm:$0xff]
    %v1666 = vpack.c.bf16 %v1662, %v1660
    %v1667 = vpack.c.bf16 %v1663, %v1661
    %v1668 = vpack.c.bf16 %v1664, %v1664
    %v1669 = vpack.c.bf16 %v1665, %v1665
    %v1670 = vld [vmem:[%s5] sm:$0xf]
    %v1671 = vld [vmem:[%s5 + $0x4] sm:$0xf]
    %v1672 = vld [vmem:[%s5 + $0x8] sm:$0xf]
    %v1673 = vld [vmem:[%s5 + $0xc] sm:$0xf]
    %v1674 = vld [vmem:[%s5 + $0x10] sm:$0xf]
    %v1675 = vld [vmem:[%s5 + $0x14] sm:$0xf]
    %v1676 = vld [vmem:[%s5 + $0x18] sm:$0xf]
    %v1677 = vld [vmem:[%s5 + $0x1c] sm:$0xf]
    %v1678 = vld [vmem:[%s5 + $0x20] sm:$0xf]
    %v1679 = vld [vmem:[%s5 + $0x24] sm:$0xf]
    %v1680 = vld [vmem:[%s5 + $0x28] sm:$0xf]
    %v1681 = vld [vmem:[%s5 + $0x2c] sm:$0xf]
    %v1682 = vld [vmem:[%s5 + $0x30] sm:$0xf]
    %v1683 = vld [vmem:[%s5 + $0x34] sm:$0xf]
    %v1684 = vld [vmem:[%s5 + $0x38] sm:$0xf]
    %v1685 = vld [vmem:[%s5 + $0x3c] sm:$0xf]
    %v1686 = vld [vmem:[%s5 + $0x40] sm:$0xf]
    %v1687 = vld [vmem:[%s5 + $0x44] sm:$0xf]
    %v1688 = vld [vmem:[%s6] sm:$0x1]
    %v1690 = vlaneseq
    %v1691 = vshrl.u32 %v1690, 7
    %v1692 = vsub.s32 0, %v1691
    %v1693 = vrot.slane %v1688, %v1692
    %v1713 = vunpack.c.l.b16 %v1670
    %v1714 = vunpack.c.l.b16 %v1671
    %v1715 = vunpack.c.l.b16 %v1672
    %v1716 = vunpack.c.l.b16 %v1673
    %v1717 = vunpack.c.l.b16 %v1674
    %v1718 = vunpack.c.l.b16 %v1675
    %v1719 = vunpack.c.l.b16 %v1676
    %v1720 = vunpack.c.l.b16 %v1677
    %v1721 = vunpack.c.l.b16 %v1678
    %v1722 = vunpack.c.l.b16 %v1679
    %v1723 = vunpack.c.l.b16 %v1680
    %v1724 = vunpack.c.l.b16 %v1681
    %v1725 = vunpack.c.l.b16 %v1682
    %v1726 = vunpack.c.l.b16 %v1683
    %v1727 = vunpack.c.l.b16 %v1684
    %v1728 = vunpack.c.l.b16 %v1685
    %v1729 = vunpack.c.l.b16 %v1686
    %v1730 = vunpack.c.l.b16 %v1687
    %v1731 = vpack.c.b16 %v1714, %v1713
    %v1732 = vpack.c.b16 %v1716, %v1715
    %v1733 = vpack.c.b16 %v1718, %v1717
    %v1734 = vpack.c.b16 %v1720, %v1719
    %v1735 = vpack.c.b16 %v1722, %v1721
    %v1736 = vpack.c.b16 %v1724, %v1723
    %v1737 = vpack.c.b16 %v1726, %v1725
    %v1738 = vpack.c.b16 %v1728, %v1727
    %v1739 = vpack.c.b16 %v1730, %v1729
    %v1750 = vsel %vm1541, %v1667, 0
    %v1753 = vsel %vm1541, %v1669, 0
    %1755 = vmatprep.subr.bf16.mxu0 0
    %1756 = vmatpush1.bf16.msra.mxu0 %v1738
    %1757 = vmatprep.subr.bf16.mxu0 0
    %1758 = vmatpush1.bf16.msra.mxu0 %v1737
    %1759 = vmatprep.subr.bf16.mxu0 0
    %1760 = vmatpush1.bf16.msra.mxu0 %v1736
    %1761 = vmatprep.subr.bf16.mxu0 0
    %1762 = vmatpush1.bf16.msra.mxu0 %v1735
    %1763 = vmatprep.subr.bf16.mxu0 0
    %1764 = vmatpush1.bf16.msra.mxu0 %v1734
    %1765 = vmatprep.subr.bf16.mxu0 0
    %1766 = vmatpush1.bf16.msra.mxu0 %v1733
    %1767 = vmatprep.subr.bf16.mxu0 0
    %1768 = vmatpush1.bf16.msra.mxu0 %v1732
    %1769 = vmatprep.subr.bf16.mxu0 0
    %1770 = vmatpush1.bf16.msra.mxu0 %v1731
    %1771 = vmatprep.subr.bf16.mxu0 0
    %1772 = vmatpush2.bf16.msra.mxu0 0
    %1773 = vmatprep.subr.bf16.mxu0 0
    %1774 = vmatpush2.bf16.msra.mxu0 0
    %1775 = vmatprep.subr.bf16.mxu0 0
    %1776 = vmatpush2.bf16.msra.mxu0 0
    %1777 = vmatprep.subr.bf16.mxu0 0
    %1778 = vmatpush2.bf16.msra.mxu0 0
    %1779 = vmatprep.subr.bf16.mxu0 0
    %1780 = vmatpush2.bf16.msra.mxu0 0
    %1781 = vmatprep.subr.bf16.mxu0 0
    %1782 = vmatpush2.bf16.msra.mxu0 0
    %1783 = vmatprep.subr.bf16.mxu0 0
    %1784 = vmatpush2.bf16.msra.mxu0 0
    %1785 = vmatprep.subr.bf16.mxu0 0
    %1786 = vmatpush2.bf16.msra.mxu0 %v1739
    %1787 = vmatprep.mubr.bf16.mxu0 %v1750
    %1788 = vmatmul.mubr.bf16.gmra.mxu0 %v1666
    %v1789 = vpop.f32.mrf.mxu0
    %v1790 = vadd.f32 %v1693, %v1789
    %v1791 = vpop.f32.mrf.mxu0
    %v1792 = vpop.f32.mrf.mxu0
    %v1793 = vadd.f32 %v1693, %v1792
    %v1794 = vpop.f32.mrf.mxu0
    %1795 = vmatprep.mubr.bf16.mxu0 %v1753
    %1796 = vmatmul.mubr.bf16.gmra.mxu0 %v1668
    %v1797 = vpop.f32.mrf.mxu0
    %v1798 = vadd.f32 %v1693, %v1797
    %v1799 = vpop.f32.mrf.mxu0
    %v1800 = vpop.f32.mrf.mxu0
    %v1801 = vpop.f32.mrf.mxu0
    %1802 = vdwg.mxu0
    %v1803 = vmax.f32 %v1790, 0.0
    %v1804 = vmax.f32 %v1793, 0.0
    %v1805 = vmax.f32 %v1798, 0.0
    %vm1806 = vcmask 261120
    %v1807 = vsel %vm1806, %v1803, -inf
    %vm1808 = vcmask 253952
    %v1809 = vsel %vm1808, %v1804, -inf
    %v1810 = vmax.f32 %v1807, %v1809
    %v1811 = vrot.slane %v1810, 4
    %v1812 = vmax.f32 %v1810, %v1811
    %v1813 = vrot.slane %v1812, 2
    %v1814 = vmax.f32 %v1812, %v1813
    %v1815 = vrot.slane %v1814, 1
    %v1816 = vmax.f32 %v1814, %v1815
    %vm1817 = vcmask 261121
    %v1818 = vsel %vm1817, %v1804, -inf
    %vm1819 = vcmask 254976
    %v1820 = vsel %vm1819, %v1805, -inf
    %v1821 = vmax.f32 %v1818, %v1820
    %v1822 = vrot.slane %v1821, 4
    %v1823 = vmax.f32 %v1821, %v1822
    %v1824 = vrot.slane %v1823, 2
    %v1825 = vmax.f32 %v1823, %v1824
    %v1826 = vrot.slane %v1825, 1
    %v1827 = vmax.f32 %v1825, %v1826
    %vm1828 = vcmask 1040384
    %v1829 = vsel %vm1828, %v1816, %v1827
    %v1830 = vpack.c.bf16 %v1829, %v1829
    %v1831 = vld [vmem:[%s7] sm:$0xff]
    %v1832 = vld [vmem:[%s7 + $0x8] sm:$0xff]
    %v1833 = vld [vmem:[%s7 + $0x10] sm:$0xff]
    %v1834 = vld [vmem:[%s7 + $0x18] sm:$0xff]
    %v1835 = vld [vmem:[%s7 + $0x20] sm:$0xff]
    %v1836 = vld [vmem:[%s7 + $0x28] sm:$0xff]
    %v1837 = vld [vmem:[%s7 + $0x30] sm:$0xff]
    %v1838 = vld [vmem:[%s7 + $0x38] sm:$0xff]
    %v1839 = vld [vmem:[%s8] sm:$0xf]
    %v1841 = vlaneseq
    %v1842 = vshrl.u32 %v1841, 7
    %v1843 = vsub.s32 0, %v1842
    %v1844 = vrot.slane %v1839, %v1843
    %v1845 = vlaneseq
    %v1846 = vshrl.u32 %v1845, 7
    %v1847 = vsub.s32 1, %v1846
    %v1848 = vrot.slane %v1839, %v1847
    %v1849 = vlaneseq
    %v1850 = vshrl.u32 %v1849, 7
    %v1851 = vsub.s32 2, %v1850
    %v1852 = vrot.slane %v1839, %v1851
    %v1853 = vlaneseq
    %v1854 = vshrl.u32 %v1853, 7
    %v1855 = vsub.s32 3, %v1854
    %v1856 = vrot.slane %v1839, %v1855
    %v1869 = vunpack.c.l.b16 %v1831
    %v1870 = vunpack.c.h.b16 %v1831
    %v1871 = vunpack.c.l.b16 %v1832
    %v1872 = vunpack.c.h.b16 %v1832
    %v1873 = vunpack.c.l.b16 %v1833
    %v1874 = vunpack.c.h.b16 %v1833
    %v1875 = vunpack.c.l.b16 %v1834
    %v1876 = vunpack.c.h.b16 %v1834
    %v1877 = vunpack.c.l.b16 %v1835
    %v1878 = vunpack.c.h.b16 %v1835
    %v1879 = vunpack.c.l.b16 %v1836
    %v1880 = vunpack.c.h.b16 %v1836
    %v1881 = vunpack.c.l.b16 %v1837
    %v1882 = vunpack.c.h.b16 %v1837
    %v1883 = vunpack.c.l.b16 %v1838
    %v1884 = vunpack.c.h.b16 %v1838
    %v1885 = vpack.c.b16 %v1873, %v1869
    %v1886 = vpack.c.b16 %v1874, %v1870
    %v1887 = vpack.c.b16 %v1875, %v1871
    %v1888 = vpack.c.b16 %v1876, %v1872
    %v1889 = vpack.c.b16 %v1881, %v1877
    %v1890 = vpack.c.b16 %v1882, %v1878
    %v1891 = vpack.c.b16 %v1883, %v1879
    %v1892 = vpack.c.b16 %v1884, %v1880
    %v1902 = vsel %vm1806, %v1830, 0
    %1904 = vmatprep.subr.bf16.mxu0 0
    %1905 = vmatpush1.bf16.msra.mxu0 0
    %1906 = vmatprep.subr.bf16.mxu0 0
    %1907 = vmatpush1.bf16.msra.mxu0 0
    %1908 = vmatprep.subr.bf16.mxu0 0
    %1909 = vmatpush1.bf16.msra.mxu0 0
    %1910 = vmatprep.subr.bf16.mxu0 0
    %1911 = vmatpush1.bf16.msra.mxu0 0
    %1912 = vmatprep.subr.bf16.mxu0 0
    %1913 = vmatpush1.bf16.msra.mxu0 0
    %1914 = vmatprep.subr.bf16.mxu0 0
    %1915 = vmatpush1.bf16.msra.mxu0 0
    %1916 = vmatprep.subr.bf16.mxu0 %v1890
    %1917 = vmatpush1.bf16.msra.mxu0 %v1889
    %1918 = vmatprep.subr.bf16.mxu0 %v1886
    %1919 = vmatpush1.bf16.msra.mxu0 %v1885
    %1920 = vmatprep.subr.bf16.mxu0 0
    %1921 = vmatpush2.bf16.msra.mxu0 0
    %1922 = vmatprep.subr.bf16.mxu0 0
    %1923 = vmatpush2.bf16.msra.mxu0 0
    %1924 = vmatprep.subr.bf16.mxu0 0
    %1925 = vmatpush2.bf16.msra.mxu0 0
    %1926 = vmatprep.subr.bf16.mxu0 0
    %1927 = vmatpush2.bf16.msra.mxu0 0
    %1928 = vmatprep.subr.bf16.mxu0 0
    %1929 = vmatpush2.bf16.msra.mxu0 0
    %1930 = vmatprep.subr.bf16.mxu0 0
    %1931 = vmatpush2.bf16.msra.mxu0 0
    %1932 = vmatprep.subr.bf16.mxu0 0
    %1933 = vmatpush2.bf16.msra.mxu0 0
    %1934 = vmatprep.subr.bf16.mxu0 0
    %1935 = vmatpush2.bf16.msra.mxu0 0
    %1936 = vmatprep.mubr.bf16.mxu0 0
    %1937 = vmatmul.mubr.bf16.gmra.mxu0 %v1902
    %v1938 = vpop.f32.mrf.mxu0
    %v1939 = vadd.f32 %v1844, %v1938
    %v1940 = vpop.f32.mrf.mxu0
    %v1941 = vadd.f32 %v1848, %v1940
    %v1942 = vpop.f32.mrf.mxu0
    %v1943 = vpop.f32.mrf.mxu0
    %1944 = vdwg.mxu0
    %1945 = vmatprep.subr.bf16.mxu0 0
    %1946 = vmatpush1.bf16.msra.mxu0 0
    %1947 = vmatprep.subr.bf16.mxu0 0
    %1948 = vmatpush1.bf16.msra.mxu0 0
    %1949 = vmatprep.subr.bf16.mxu0 0
    %1950 = vmatpush1.bf16.msra.mxu0 0
    %1951 = vmatprep.subr.bf16.mxu0 0
    %1952 = vmatpush1.bf16.msra.mxu0 0
    %1953 = vmatprep.subr.bf16.mxu0 0
    %1954 = vmatpush1.bf16.msra.mxu0 0
    %1955 = vmatprep.subr.bf16.mxu0 0
    %1956 = vmatpush1.bf16.msra.mxu0 0
    %1957 = vmatprep.subr.bf16.mxu0 %v1892
    %1958 = vmatpush1.bf16.msra.mxu0 %v1891
    %1959 = vmatprep.subr.bf16.mxu0 %v1888
    %1960 = vmatpush1.bf16.msra.mxu0 %v1887
    %1961 = vmatprep.subr.bf16.mxu0 0
    %1962 = vmatpush2.bf16.msra.mxu0 0
    %1963 = vmatprep.subr.bf16.mxu0 0
    %1964 = vmatpush2.bf16.msra.mxu0 0
    %1965 = vmatprep.subr.bf16.mxu0 0
    %1966 = vmatpush2.bf16.msra.mxu0 0
    %1967 = vmatprep.subr.bf16.mxu0 0
    %1968 = vmatpush2.bf16.msra.mxu0 0
    %1969 = vmatprep.subr.bf16.mxu0 0
    %1970 = vmatpush2.bf16.msra.mxu0 0
    %1971 = vmatprep.subr.bf16.mxu0 0
    %1972 = vmatpush2.bf16.msra.mxu0 0
    %1973 = vmatprep.subr.bf16.mxu0 0
    %1974 = vmatpush2.bf16.msra.mxu0 0
    %1975 = vmatprep.subr.bf16.mxu0 0
    %1976 = vmatpush2.bf16.msra.mxu0 0
    %1977 = vmatprep.mubr.bf16.mxu0 0
    %1978 = vmatmul.mubr.bf16.gmra.mxu0 %v1902
    %v1979 = vpop.f32.mrf.mxu0
    %v1980 = vadd.f32 %v1852, %v1979
    %v1981 = vpop.f32.mrf.mxu0
    %v1982 = vadd.f32 %v1856, %v1981
    %v1983 = vpop.f32.mrf.mxu0
    %v1984 = vpop.f32.mrf.mxu0
    %1985 = vdwg.mxu0
    %v1986 = vmax.f32 %v1939, 0.0
    %v1987 = vmax.f32 %v1941, 0.0
    %v1988 = vmax.f32 %v1980, 0.0
    %v1989 = vmax.f32 %v1982, 0.0
    %v1990 = vpack.c.bf16 %v1986, %v1986
    %v1991 = vpack.c.bf16 %v1987, %v1987
    %v1992 = vpack.c.bf16 %v1988, %v1988
    %v1993 = vpack.c.bf16 %v1989, %v1989
    %v1994 = vld [vmem:[%s9] sm:$0xf]
    %v1995 = vld [vmem:[%s9 + $0x4] sm:$0xf]
    %v1996 = vld [vmem:[%s9 + $0x8] sm:$0xf]
    %v1997 = vld [vmem:[%s9 + $0xc] sm:$0xf]
    %v1998 = vld [vmem:[%s9 + $0x10] sm:$0xf]
    %v1999 = vld [vmem:[%s9 + $0x14] sm:$0xf]
    %v2000 = vld [vmem:[%s9 + $0x18] sm:$0xf]
    %v2001 = vld [vmem:[%s9 + $0x1c] sm:$0xf]
    %v2002 = vld [vmem:[%s9 + $0x20] sm:$0xf]
    %v2003 = vld [vmem:[%s9 + $0x24] sm:$0xf]
    %v2004 = vld [vmem:[%s9 + $0x28] sm:$0xf]
    %v2005 = vld [vmem:[%s9 + $0x2c] sm:$0xf]
    %v2006 = vld [vmem:[%s9 + $0x30] sm:$0xf]
    %v2007 = vld [vmem:[%s9 + $0x34] sm:$0xf]
    %v2008 = vld [vmem:[%s9 + $0x38] sm:$0xf]
    %v2009 = vld [vmem:[%s9 + $0x3c] sm:$0xf]
    %v2010 = vld [vmem:[%s9 + $0x40] sm:$0xf]
    %v2011 = vld [vmem:[%s9 + $0x44] sm:$0xf]
    %v2012 = vld [vmem:[%s9 + $0x48] sm:$0xf]
    %v2013 = vld [vmem:[%s9 + $0x4c] sm:$0xf]
    %v2014 = vld [vmem:[%s9 + $0x50] sm:$0xf]
    %v2015 = vld [vmem:[%s9 + $0x54] sm:$0xf]
    %v2016 = vld [vmem:[%s9 + $0x58] sm:$0xf]
    %v2017 = vld [vmem:[%s9 + $0x5c] sm:$0xf]
    %v2018 = vld [vmem:[%s9 + $0x60] sm:$0xf]
    %v2019 = vld [vmem:[%s9 + $0x64] sm:$0xf]
    %v2020 = vld [vmem:[%s9 + $0x68] sm:$0xf]
    %v2021 = vld [vmem:[%s9 + $0x6c] sm:$0xf]
    %v2022 = vld [vmem:[%s9 + $0x70] sm:$0xf]
    %v2023 = vld [vmem:[%s9 + $0x74] sm:$0xf]
    %v2024 = vld [vmem:[%s9 + $0x78] sm:$0xf]
    %v2025 = vld [vmem:[%s9 + $0x7c] sm:$0xf]
    %v2026 = vld [vmem:[%s9 + $0x80] sm:$0xf]
    %v2027 = vld [vmem:[%s9 + $0x84] sm:$0xf]
    %v2028 = vld [vmem:[%s9 + $0x88] sm:$0xf]
    %v2029 = vld [vmem:[%s9 + $0x8c] sm:$0xf]
    %v2030 = vld [vmem:[%s9 + $0x90] sm:$0xf]
    %v2031 = vld [vmem:[%s9 + $0x94] sm:$0xf]
    %v2032 = vld [vmem:[%s9 + $0x98] sm:$0xf]
    %v2033 = vld [vmem:[%s9 + $0x9c] sm:$0xf]
    %v2034 = vld [vmem:[%s9 + $0xa0] sm:$0xf]
    %v2035 = vld [vmem:[%s9 + $0xa4] sm:$0xf]
    %v2036 = vld [vmem:[%s9 + $0xa8] sm:$0xf]
    %v2037 = vld [vmem:[%s9 + $0xac] sm:$0xf]
    %v2038 = vld [vmem:[%s9 + $0xb0] sm:$0xf]
    %v2039 = vld [vmem:[%s9 + $0xb4] sm:$0xf]
    %v2040 = vld [vmem:[%s9 + $0xb8] sm:$0xf]
    %v2041 = vld [vmem:[%s9 + $0xbc] sm:$0xf]
    %v2042 = vld [vmem:[%s9 + $0xc0] sm:$0xf]
    %v2043 = vld [vmem:[%s9 + $0xc4] sm:$0xf]
    %v2044 = vld [vmem:[%s9 + $0xc8] sm:$0xf]
    %v2045 = vld [vmem:[%s9 + $0xcc] sm:$0xf]
    %v2046 = vld [vmem:[%s9 + $0xd0] sm:$0xf]
    %v2047 = vld [vmem:[%s9 + $0xd4] sm:$0xf]
    %v2048 = vld [vmem:[%s9 + $0xd8] sm:$0xf]
    %v2049 = vld [vmem:[%s9 + $0xdc] sm:$0xf]
    %v2050 = vld [vmem:[%s9 + $0xe0] sm:$0xf]
    %v2051 = vld [vmem:[%s9 + $0xe4] sm:$0xf]
    %v2052 = vld [vmem:[%s9 + $0xe8] sm:$0xf]
    %v2053 = vld [vmem:[%s9 + $0xec] sm:$0xf]
    %v2054 = vld [vmem:[%s9 + $0xf0] sm:$0xf]
    %v2055 = vld [vmem:[%s9 + $0xf4] sm:$0xf]
    %v2056 = vld [vmem:[%s9 + $0xf8] sm:$0xf]
    %v2057 = vld [vmem:[%s9 + $0xfc] sm:$0xf]
    %v2058 = vld [vmem:[%s10] sm:$0x1]
    %v2060 = vlaneseq
    %v2061 = vshrl.u32 %v2060, 7
    %v2062 = vsub.s32 0, %v2061
    %v2063 = vrot.slane %v2058, %v2062
    %v2129 = vunpack.c.l.b16 %v1994
    %v2130 = vunpack.c.l.b16 %v1995
    %v2131 = vunpack.c.l.b16 %v1996
    %v2132 = vunpack.c.l.b16 %v1997
    %v2133 = vunpack.c.l.b16 %v1998
    %v2134 = vunpack.c.l.b16 %v1999
    %v2135 = vunpack.c.l.b16 %v2000
    %v2136 = vunpack.c.l.b16 %v2001
    %v2137 = vunpack.c.l.b16 %v2002
    %v2138 = vunpack.c.l.b16 %v2003
    %v2139 = vunpack.c.l.b16 %v2004
    %v2140 = vunpack.c.l.b16 %v2005
    %v2141 = vunpack.c.l.b16 %v2006
    %v2142 = vunpack.c.l.b16 %v2007
    %v2143 = vunpack.c.l.b16 %v2008
    %v2144 = vunpack.c.l.b16 %v2009
    %v2145 = vunpack.c.l.b16 %v2010
    %v2146 = vunpack.c.l.b16 %v2011
    %v2147 = vunpack.c.l.b16 %v2012
    %v2148 = vunpack.c.l.b16 %v2013
    %v2149 = vunpack.c.l.b16 %v2014
    %v2150 = vunpack.c.l.b16 %v2015
    %v2151 = vunpack.c.l.b16 %v2016
    %v2152 = vunpack.c.l.b16 %v2017
    %v2153 = vunpack.c.l.b16 %v2018
    %v2154 = vunpack.c.l.b16 %v2019
    %v2155 = vunpack.c.l.b16 %v2020
    %v2156 = vunpack.c.l.b16 %v2021
    %v2157 = vunpack.c.l.b16 %v2022
    %v2158 = vunpack.c.l.b16 %v2023
    %v2159 = vunpack.c.l.b16 %v2024
    %v2160 = vunpack.c.l.b16 %v2025
    %v2161 = vunpack.c.l.b16 %v2026
    %v2162 = vunpack.c.l.b16 %v2027
    %v2163 = vunpack.c.l.b16 %v2028
    %v2164 = vunpack.c.l.b16 %v2029
    %v2165 = vunpack.c.l.b16 %v2030
    %v2166 = vunpack.c.l.b16 %v2031
    %v2167 = vunpack.c.l.b16 %v2032
    %v2168 = vunpack.c.l.b16 %v2033
    %v2169 = vunpack.c.l.b16 %v2034
    %v2170 = vunpack.c.l.b16 %v2035
    %v2171 = vunpack.c.l.b16 %v2036
    %v2172 = vunpack.c.l.b16 %v2037
    %v2173 = vunpack.c.l.b16 %v2038
    %v2174 = vunpack.c.l.b16 %v2039
    %v2175 = vunpack.c.l.b16 %v2040
    %v2176 = vunpack.c.l.b16 %v2041
    %v2177 = vunpack.c.l.b16 %v2042
    %v2178 = vunpack.c.l.b16 %v2043
    %v2179 = vunpack.c.l.b16 %v2044
    %v2180 = vunpack.c.l.b16 %v2045
    %v2181 = vunpack.c.l.b16 %v2046
    %v2182 = vunpack.c.l.b16 %v2047
    %v2183 = vunpack.c.l.b16 %v2048
    %v2184 = vunpack.c.l.b16 %v2049
    %v2185 = vunpack.c.l.b16 %v2050
    %v2186 = vunpack.c.l.b16 %v2051
    %v2187 = vunpack.c.l.b16 %v2052
    %v2188 = vunpack.c.l.b16 %v2053
    %v2189 = vunpack.c.l.b16 %v2054
    %v2190 = vunpack.c.l.b16 %v2055
    %v2191 = vunpack.c.l.b16 %v2056
    %v2192 = vunpack.c.l.b16 %v2057
    %v2193 = vpack.c.b16 %v2130, %v2129
    %v2194 = vpack.c.b16 %v2132, %v2131
    %v2195 = vpack.c.b16 %v2134, %v2133
    %v2196 = vpack.c.b16 %v2136, %v2135
    %v2197 = vpack.c.b16 %v2138, %v2137
    %v2198 = vpack.c.b16 %v2140, %v2139
    %v2199 = vpack.c.b16 %v2142, %v2141
    %v2200 = vpack.c.b16 %v2144, %v2143
    %v2201 = vpack.c.b16 %v2146, %v2145
    %v2202 = vpack.c.b16 %v2148, %v2147
    %v2203 = vpack.c.b16 %v2150, %v2149
    %v2204 = vpack.c.b16 %v2152, %v2151
    %v2205 = vpack.c.b16 %v2154, %v2153
    %v2206 = vpack.c.b16 %v2156, %v2155
    %v2207 = vpack.c.b16 %v2158, %v2157
    %v2208 = vpack.c.b16 %v2160, %v2159
    %v2209 = vpack.c.b16 %v2162, %v2161
    %v2210 = vpack.c.b16 %v2164, %v2163
    %v2211 = vpack.c.b16 %v2166, %v2165
    %v2212 = vpack.c.b16 %v2168, %v2167
    %v2213 = vpack.c.b16 %v2170, %v2169
    %v2214 = vpack.c.b16 %v2172, %v2171
    %v2215 = vpack.c.b16 %v2174, %v2173
    %v2216 = vpack.c.b16 %v2176, %v2175
    %v2217 = vpack.c.b16 %v2178, %v2177
    %v2218 = vpack.c.b16 %v2180, %v2179
    %v2219 = vpack.c.b16 %v2182, %v2181
    %v2220 = vpack.c.b16 %v2184, %v2183
    %v2221 = vpack.c.b16 %v2186, %v2185
    %v2222 = vpack.c.b16 %v2188, %v2187
    %v2223 = vpack.c.b16 %v2190, %v2189
    %v2224 = vpack.c.b16 %v2192, %v2191
    %2257 = vmatprep.subr.bf16.mxu0 0
    %2258 = vmatpush1.bf16.msra.mxu0 %v2200
    %2259 = vmatprep.subr.bf16.mxu0 0
    %2260 = vmatpush1.bf16.msra.mxu0 %v2199
    %2261 = vmatprep.subr.bf16.mxu0 0
    %2262 = vmatpush1.bf16.msra.mxu0 %v2198
    %2263 = vmatprep.subr.bf16.mxu0 0
    %2264 = vmatpush1.bf16.msra.mxu0 %v2197
    %2265 = vmatprep.subr.bf16.mxu0 0
    %2266 = vmatpush1.bf16.msra.mxu0 %v2196
    %2267 = vmatprep.subr.bf16.mxu0 0
    %2268 = vmatpush1.bf16.msra.mxu0 %v2195
    %2269 = vmatprep.subr.bf16.mxu0 0
    %2270 = vmatpush1.bf16.msra.mxu0 %v2194
    %2271 = vmatprep.subr.bf16.mxu0 0
    %2272 = vmatpush1.bf16.msra.mxu0 %v2193
    %2273 = vmatprep.subr.bf16.mxu0 0
    %2274 = vmatpush2.bf16.msra.mxu0 %v2208
    %2275 = vmatprep.subr.bf16.mxu0 0
    %2276 = vmatpush2.bf16.msra.mxu0 %v2207
    %2277 = vmatprep.subr.bf16.mxu0 0
    %2278 = vmatpush2.bf16.msra.mxu0 %v2206
    %2279 = vmatprep.subr.bf16.mxu0 0
    %2280 = vmatpush2.bf16.msra.mxu0 %v2205
    %2281 = vmatprep.subr.bf16.mxu0 0
    %2282 = vmatpush2.bf16.msra.mxu0 %v2204
    %2283 = vmatprep.subr.bf16.mxu0 0
    %2284 = vmatpush2.bf16.msra.mxu0 %v2203
    %2285 = vmatprep.subr.bf16.mxu0 0
    %2286 = vmatpush2.bf16.msra.mxu0 %v2202
    %2287 = vmatprep.subr.bf16.mxu0 0
    %2288 = vmatpush2.bf16.msra.mxu0 %v2201
    %2289 = vmatprep.mubr.bf16.mxu0 %v1991
    %2290 = vmatmul.mubr.bf16.gmra.mxu0 %v1990
    %v2291 = vpop.f32.mrf.mxu0
    %v2292 = vadd.f32 %v2063, %v2291
    %v2293 = vpop.f32.mrf.mxu0
    %v2294 = vpop.f32.mrf.mxu0
    %v2295 = vpop.f32.mrf.mxu0
    %2296 = vdwg.mxu0
    %2297 = vmatprep.subr.bf16.mxu0 0
    %2298 = vmatpush1.bf16.msra.mxu0 %v2216
    %2299 = vmatprep.subr.bf16.mxu0 0
    %2300 = vmatpush1.bf16.msra.mxu0 %v2215
    %2301 = vmatprep.subr.bf16.mxu0 0
    %2302 = vmatpush1.bf16.msra.mxu0 %v2214
    %2303 = vmatprep.subr.bf16.mxu0 0
    %2304 = vmatpush1.bf16.msra.mxu0 %v2213
    %2305 = vmatprep.subr.bf16.mxu0 0
    %2306 = vmatpush1.bf16.msra.mxu0 %v2212
    %2307 = vmatprep.subr.bf16.mxu0 0
    %2308 = vmatpush1.bf16.msra.mxu0 %v2211
    %2309 = vmatprep.subr.bf16.mxu0 0
    %2310 = vmatpush1.bf16.msra.mxu0 %v2210
    %2311 = vmatprep.subr.bf16.mxu0 0
    %2312 = vmatpush1.bf16.msra.mxu0 %v2209
    %2313 = vmatprep.subr.bf16.mxu0 0
    %2314 = vmatpush2.bf16.msra.mxu0 %v2224
    %2315 = vmatprep.subr.bf16.mxu0 0
    %2316 = vmatpush2.bf16.msra.mxu0 %v2223
    %2317 = vmatprep.subr.bf16.mxu0 0
    %2318 = vmatpush2.bf16.msra.mxu0 %v2222
    %2319 = vmatprep.subr.bf16.mxu0 0
    %2320 = vmatpush2.bf16.msra.mxu0 %v2221
    %2321 = vmatprep.subr.bf16.mxu0 0
    %2322 = vmatpush2.bf16.msra.mxu0 %v2220
    %2323 = vmatprep.subr.bf16.mxu0 0
    %2324 = vmatpush2.bf16.msra.mxu0 %v2219
    %2325 = vmatprep.subr.bf16.mxu0 0
    %2326 = vmatpush2.bf16.msra.mxu0 %v2218
    %2327 = vmatprep.subr.bf16.mxu0 0
    %2328 = vmatpush2.bf16.msra.mxu0 %v2217
    %2329 = vmatprep.mubr.bf16.mxu0 %v1993
    %2330 = vmatmul.mubr.bf16.gmra.mxu0 %v1992
    %v2331 = vpop.f32.mrf.mxu0
    %v2332 = vadd.f32 %v2292, %v2331
    %v2333 = vpop.f32.mrf.mxu0
    %v2334 = vpop.f32.mrf.mxu0
    %v2335 = vpop.f32.mrf.mxu0
    %2336 = vdwg.mxu0
    %v2337 = vmax.f32 %v2332, 0.0
    %v2338 = vpack.c.bf16 %v2337, %v2337
    %v2339 = vld [vmem:[%s11] sm:$0xf]
    %v2340 = vld [vmem:[%s11 + $0x4] sm:$0xf]
    %v2341 = vld [vmem:[%s11 + $0x8] sm:$0xf]
    %v2342 = vld [vmem:[%s11 + $0xc] sm:$0xf]
    %v2343 = vld [vmem:[%s11 + $0x10] sm:$0xf]
    %v2344 = vld [vmem:[%s11 + $0x14] sm:$0xf]
    %v2345 = vld [vmem:[%s11 + $0x18] sm:$0xf]
    %v2346 = vld [vmem:[%s11 + $0x1c] sm:$0xf]
    %v2347 = vld [vmem:[%s12] sm:$0x1]
    %v2349 = vlaneseq
    %v2350 = vshrl.u32 %v2349, 7
    %v2351 = vsub.s32 0, %v2350
    %v2352 = vrot.slane %v2347, %v2351
    %v2362 = vunpack.c.l.b16 %v2339
    %v2363 = vunpack.c.l.b16 %v2340
    %v2364 = vunpack.c.l.b16 %v2341
    %v2365 = vunpack.c.l.b16 %v2342
    %v2366 = vunpack.c.l.b16 %v2343
    %v2367 = vunpack.c.l.b16 %v2344
    %v2368 = vunpack.c.l.b16 %v2345
    %v2369 = vunpack.c.l.b16 %v2346
    %v2370 = vpack.c.b16 %v2363, %v2362
    %v2371 = vpack.c.b16 %v2365, %v2364
    %v2372 = vpack.c.b16 %v2367, %v2366
    %v2373 = vpack.c.b16 %v2369, %v2368
    %v2379 = vsel %vm764, %v2338, 0
    %2381 = vmatprep.subr.bf16.mxu0 0
    %2382 = vmatpush1.bf16.msra.mxu0 0
    %2383 = vmatprep.subr.bf16.mxu0 0
    %2384 = vmatpush1.bf16.msra.mxu0 0
    %2385 = vmatprep.subr.bf16.mxu0 0
    %2386 = vmatpush1.bf16.msra.mxu0 0
    %2387 = vmatprep.subr.bf16.mxu0 0
    %2388 = vmatpush1.bf16.msra.mxu0 0
    %2389 = vmatprep.subr.bf16.mxu0 0
    %2390 = vmatpush1.bf16.msra.mxu0 %v2373
    %2391 = vmatprep.subr.bf16.mxu0 0
    %2392 = vmatpush1.bf16.msra.mxu0 %v2372
    %2393 = vmatprep.subr.bf16.mxu0 0
    %2394 = vmatpush1.bf16.msra.mxu0 %v2371
    %2395 = vmatprep.subr.bf16.mxu0 0
    %2396 = vmatpush1.bf16.msra.mxu0 %v2370
    %2397 = vmatprep.subr.bf16.mxu0 0
    %2398 = vmatpush2.bf16.msra.mxu0 0
    %2399 = vmatprep.subr.bf16.mxu0 0
    %2400 = vmatpush2.bf16.msra.mxu0 0
    %2401 = vmatprep.subr.bf16.mxu0 0
    %2402 = vmatpush2.bf16.msra.mxu0 0
    %2403 = vmatprep.subr.bf16.mxu0 0
    %2404 = vmatpush2.bf16.msra.mxu0 0
    %2405 = vmatprep.subr.bf16.mxu0 0
    %2406 = vmatpush2.bf16.msra.mxu0 0
    %2407 = vmatprep.subr.bf16.mxu0 0
    %2408 = vmatpush2.bf16.msra.mxu0 0
    %2409 = vmatprep.subr.bf16.mxu0 0
    %2410 = vmatpush2.bf16.msra.mxu0 0
    %2411 = vmatprep.subr.bf16.mxu0 0
    %2412 = vmatpush2.bf16.msra.mxu0 0
    %2413 = vmatprep.mubr.bf16.mxu0 0
    %2414 = vmatmul.mubr.bf16.gmra.mxu0 %v2379
    %v2415 = vpop.f32.mrf.mxu0
    %v2416 = vadd.f32 %v2352, %v2415
    %v2417 = vpop.f32.mrf.mxu0
    %v2418 = vpop.f32.mrf.mxu0
    %v2419 = vpop.f32.mrf.mxu0
    %2420 = vdwg.mxu0
    %v2421 = vxor.u32 %v2416, 2147483648
    %v2422 = vmul.f32 %v2421, 1.442695
    %v2423 = vpow.pop %v2422
    %v2424 = vadd.f32 %v2423, 1.0
    %v2425 = vrcp.pop %v2424
    %v2426 = vmul.f32 1.0, %v2425
    %vm2427 = vcmask 25600
    %2428 = vst.msk [vmem:[#allocation3] sm:$0x3] %vm2427, %v2426
    // Predicated region
    $region54: #{cnn3_fc3_forward.1} parent=1 // pred_check
      _
    $region55: #{cnn3_fc3_forward.1} parent=1 // pred_check_branch
      %2430 = sbr.rel (0) target = $region57
    $region56: #{cnn3_fc3_forward.1} parent=1 // pred_region
      %s2432 = ssub.s32 32, 32
      %2433 = vsyncadd [#allocation4], %s2432
      %s2435 = sshll.u32 [#allocation3], 4
      %s2436 = int_to_ptr.vmem [resolvable:$true] %s2435
      %2438 = dma.vmem_to_hbm [thread:$0]  %s2436, 32, %s13, [#allocation4]
    $region57: #{cnn3_fc3_forward.1} parent=1 // pred_fallthru
      _
    // Predicated region
    $region58: #{cnn3_fc3_forward.1} parent=1 // pred_check
      _
    $region59: #{cnn3_fc3_forward.1} parent=1 // pred_check_branch
      %2440 = sbr.rel (0) target = $region61
    $region60: #{cnn3_fc3_forward.1} parent=1 // pred_region
      %2441 = dma.done [#allocation4], 32
    $region61: #{cnn3_fc3_forward.1} parent=1 // pred_fallthru
      _
    %2442 = vsyncpa [#allocation4], 1

</llo_original>
